<compile_context>
chip_gen: v7x
topology: tpu7x:2x2x1
jax: 0.10.0
libtpu: 0.0.40
codegen_flags: <defaults>
</compile_context>

<pallas_src>
import numpy as np
import jax
import jax.numpy as jnp
from jax.experimental import pallas as pl
from jax.experimental.pallas import tpu as pltpu

_NEG_BIG = -1e30   # effectively -inf for f32 softmax masking of padded logits
_LANE = 128


def _round_up(n, m):
    return (n + m - 1) // m * m


def mlp_softmax_kernel(x_ref, w1_ref, b1_ref, w2_ref, b2_ref, w3_ref, b3_ref,
                       o_ref):
    """One batch tile: x [TM, D_in] (bf16) -> softmax probs [TM, OUT_PAD] (f32)."""
    x = x_ref[...]                                            # bf16 [TM, D_in]

    # fc1 + ReLU (bf16 MXU inputs, f32 accumulation, f32 bias / ReLU)
    h1 = jnp.dot(x, w1_ref[...], preferred_element_type=jnp.float32) + b1_ref[...]
    h1 = jnp.maximum(h1, 0.0).astype(jnp.bfloat16)

    # fc2 + ReLU
    h2 = jnp.dot(h1, w2_ref[...], preferred_element_type=jnp.float32) + b2_ref[...]
    h2 = jnp.maximum(h2, 0.0).astype(jnp.bfloat16)

    # fc3 (padded output columns carry a -1e30 bias -> exp() underflows to 0)
    logits = jnp.dot(h2, w3_ref[...], preferred_element_type=jnp.float32) + b3_ref[...]

    # numerically-stable softmax over the lane-dense (padded) feature axis
    m = jnp.max(logits, axis=-1, keepdims=True)
    e = jnp.exp(logits - m)
    s = jnp.sum(e, axis=-1, keepdims=True)
    o_ref[...] = e * pl.reciprocal(s, approx=True)


def classifier_forward(x, params, *, tm=512):
    """Full forward pass. x: [B, D_in] float32 -> probs [B, D_out] float32."""
    w1, b1, w2, b2, w3, b3 = params
    B, d_in = x.shape
    h1_dim = w1.shape[1]
    h2_dim = w2.shape[1]
    d_out = w3.shape[1]
    out_pad = _round_up(d_out, _LANE)

    # Batch tiling: TM rows per grid step (multiple of 8; 512 is also a
    # multiple of 128, keeping v5e's 128-wide MXU rows fully fed).
    tm = int(min(tm, _round_up(B, 8)))
    b_pad = _round_up(B, tm)

    # bf16 matmul operands: halves HBM bytes for x and ~3x less MXU work.
    xb = x.astype(jnp.bfloat16)
    if b_pad != B:
        xb = jnp.pad(xb, ((0, b_pad - B), (0, 0)))
    w1b = w1.astype(jnp.bfloat16)
    w2b = w2.astype(jnp.bfloat16)
    # Lane-dense fc3: pad the output feature dim to 128; padded columns get a
    # huge negative bias so they contribute exactly 0 to the softmax.
    w3b = jnp.pad(w3, ((0, 0), (0, out_pad - d_out))).astype(jnp.bfloat16)
    b3p = jnp.pad(b3, ((0, 0), (0, out_pad - d_out)), constant_values=_NEG_BIG)

    grid = (b_pad // tm,)
    resident = lambda i: (0, 0)      # weights/biases: same block every grid step

    cost = pl.CostEstimate(
        flops=2 * b_pad * (d_in * h1_dim + h1_dim * h2_dim + h2_dim * out_pad),
        transcendentals=b_pad * out_pad,
        bytes_accessed=(xb.size * 2 + b_pad * out_pad * 4
                        + (w1b.size + w2b.size + w3b.size) * 2
                        + (b1.size + b2.size + b3p.size) * 4),
    )

    out = pl.pallas_call(
        mlp_softmax_kernel,
        out_shape=jax.ShapeDtypeStruct((b_pad, out_pad), jnp.float32),
        grid=grid,
        in_specs=[
            pl.BlockSpec((tm, d_in), lambda i: (i, 0)),   # x: tiled over batch
            pl.BlockSpec((d_in, h1_dim), resident),       # w1 (VMEM-resident)
            pl.BlockSpec((1, h1_dim), resident),          # b1
            pl.BlockSpec((h1_dim, h2_dim), resident),     # w2
            pl.BlockSpec((1, h2_dim), resident),          # b2
            pl.BlockSpec((h2_dim, out_pad), resident),    # w3 (lane-padded)
            pl.BlockSpec((1, out_pad), resident),         # b3 (lane-padded)
        ],
        out_specs=pl.BlockSpec((tm, out_pad), lambda i: (i, 0)),
        compiler_params=pltpu.CompilerParams(
            dimension_semantics=("parallel",)),
        cost_estimate=cost,
    )(xb, w1b, b1, w2b, b2, w3b, b3p)

    return out[:B, :d_out]


def init_params(key, d_in, h1, h2, d_out):
    """PyTorch-style uniform(+-1/sqrt(fan_in)) init; weights stored [in, out]."""
    def linear(key, fan_in, fan_out):
        kw, kb = jax.random.split(key)
        bound = 1.0 / np.sqrt(fan_in)
        w = jax.random.uniform(kw, (fan_in, fan_out), jnp.float32, -bound, bound)
        b = jax.random.uniform(kb, (1, fan_out), jnp.float32, -bound, bound)
        return w, b

    k1, k2, k3 = jax.random.split(key, 3)
    w1, b1 = linear(k1, d_in, h1)
    w2, b2 = linear(k2, h1, h2)
    w3, b3 = linear(k3, h2, d_out)
    return w1, b1, w2, b2, w3, b3


def reference_forward(x, params, matmul_dtype=jnp.float32):
    """Plain-JAX reference of the PyTorch forward; optionally mimic the
    kernel's bf16 matmul inputs for a tight numerical check."""
    w1, b1, w2, b2, w3, b3 = params
    c = lambda a: a.astype(matmul_dtype).astype(jnp.float32)
    h1 = jnp.maximum(c(x) @ c(w1) + b1, 0.0)
    h2 = jnp.maximum(c(h1) @ c(w2) + b2, 0.0)
    logits = c(h2) @ c(w3) + b3
    return jax.nn.softmax(logits, axis=1)


if __name__ == "__main__":
    # Sizes implied by the module:
    #   D_in = len(bl_train[0]) -> 32
    #   H1 = ceil(D_in/2) = 16, H2 = ceil(H1/2) = 8, D_out = #classes -> 4
    # Batch is large-ish so a single launch is amortized over many rows
    # (the kernel is launch/latency-bound at tiny batch), and 1000 is
    # deliberately not a multiple of TM to exercise the padding path.
    B, D_in = 1000, 32
    H1 = int(np.ceil(D_in / 2))
    H2 = int(np.ceil(H1 / 2))
    D_out = 4

    key = jax.random.PRNGKey(0)
    kx, kp = jax.random.split(key)
    x = jax.random.normal(kx, (B, D_in), dtype=jnp.float32)
    params = init_params(kp, D_in, H1, H2, D_out)

    fwd = jax.jit(classifier_forward)
    out = jax.block_until_ready(fwd(x, params))
    assert out.shape == (B, D_out)

    out_np = np.asarray(out)
    # tight check vs. a reference that mimics the kernel's bf16 matmul inputs
    ref_bf16 = np.asarray(reference_forward(x, params, matmul_dtype=jnp.bfloat16))
    np.testing.assert_allclose(out_np, ref_bf16, rtol=5e-3, atol=5e-3)
    # loose check vs. the pure-f32 PyTorch-equivalent forward
    ref_f32 = np.asarray(reference_forward(x, params))
    np.testing.assert_allclose(out_np, ref_f32, rtol=0, atol=6e-2)
    # softmax rows sum to 1 (approx reciprocal -> slightly relaxed tolerance)
    np.testing.assert_allclose(out_np.sum(axis=1), np.ones(B), rtol=0, atol=5e-3)

    print("KERNEL_OK")
</pallas_src>

<mosaic_0001>
module attributes {stable_mosaic.version = 11 : i64} {
  func.func @mlp_softmax_kernel(%arg0: i32, %arg1: memref<512x32xbf16, #tpu.memory_space<vmem>>, %arg2: memref<32x16xbf16, #tpu.memory_space<vmem>>, %arg3: memref<1x16xf32, #tpu.memory_space<vmem>>, %arg4: memref<16x8xbf16, #tpu.memory_space<vmem>>, %arg5: memref<1x8xf32, #tpu.memory_space<vmem>>, %arg6: memref<8x128xbf16, #tpu.memory_space<vmem>>, %arg7: memref<1x128xf32, #tpu.memory_space<vmem>>, %arg8: memref<512x128xf32, #tpu.memory_space<vmem>>) attributes {dimension_semantics = [#tpu.dimension_semantics<parallel>], iteration_bounds = array<i64: 2>, scalar_prefetch = 0 : i64, scratch_operands = 0 : i64, tpu.core_type = #tpu.core_type<tc>, window_params = [{transform_indices = @transform_0, window_bounds = array<i64: 512, 32>}, {pipeline_mode = #tpu.pipeline_mode<synchronous>, transform_indices = @transform_1, window_bounds = array<i64: 32, 16>}, {pipeline_mode = #tpu.pipeline_mode<synchronous>, transform_indices = @transform_2, window_bounds = array<i64: 1, 16>}, {pipeline_mode = #tpu.pipeline_mode<synchronous>, transform_indices = @transform_3, window_bounds = array<i64: 16, 8>}, {pipeline_mode = #tpu.pipeline_mode<synchronous>, transform_indices = @transform_4, window_bounds = array<i64: 1, 8>}, {pipeline_mode = #tpu.pipeline_mode<synchronous>, transform_indices = @transform_5, window_bounds = array<i64: 8, 128>}, {pipeline_mode = #tpu.pipeline_mode<synchronous>, transform_indices = @transform_6, window_bounds = array<i64: 1, 128>}, {transform_indices = @transform_7, window_bounds = array<i64: 512, 128>}]} {
    %c0 = arith.constant 0 : index
    %c0_0 = arith.constant 0 : index
    %0 = vector.load %arg1[%c0, %c0_0] : memref<512x32xbf16, #tpu.memory_space<vmem>>, vector<512x32xbf16>
    %c0_1 = arith.constant 0 : index
    %c0_2 = arith.constant 0 : index
    %1 = vector.load %arg2[%c0_1, %c0_2] : memref<32x16xbf16, #tpu.memory_space<vmem>>, vector<32x16xbf16>
    %cst = arith.constant dense<0.000000e+00> : vector<512x16xf32>
    %2 = tpu.matmul %0, %1, %cst {dimension_numbers = #tpu.dot_dimension_numbers<[1], [0], [0], [1], [0, 0, 1, 1], [], []>} : vector<512x32xbf16>, vector<32x16xbf16>, vector<512x16xf32> -> vector<512x16xf32>
    %c0_3 = arith.constant 0 : index
    %c0_4 = arith.constant 0 : index
    %3 = vector.load %arg3[%c0_3, %c0_4] : memref<1x16xf32, #tpu.memory_space<vmem>>, vector<1x16xf32>
    %4 = vector.broadcast %3 : vector<1x16xf32> to vector<512x16xf32>
    %5 = arith.addf %2, %4 : vector<512x16xf32>
    %cst_5 = arith.constant 0.000000e+00 : f32
    %6 = vector.broadcast %cst_5 : f32 to vector<512x16xf32>
    %7 = arith.maximumf %5, %6 : vector<512x16xf32>
    %8 = arith.truncf %7 : vector<512x16xf32> to vector<512x16xbf16>
    %c0_6 = arith.constant 0 : index
    %c0_7 = arith.constant 0 : index
    %9 = vector.load %arg4[%c0_6, %c0_7] : memref<16x8xbf16, #tpu.memory_space<vmem>>, vector<16x8xbf16>
    %cst_8 = arith.constant dense<0.000000e+00> : vector<512x8xf32>
    %10 = tpu.matmul %8, %9, %cst_8 {dimension_numbers = #tpu.dot_dimension_numbers<[1], [0], [0], [1], [0, 0, 1, 1], [], []>} : vector<512x16xbf16>, vector<16x8xbf16>, vector<512x8xf32> -> vector<512x8xf32>
    %c0_9 = arith.constant 0 : index
    %c0_10 = arith.constant 0 : index
    %11 = vector.load %arg5[%c0_9, %c0_10] : memref<1x8xf32, #tpu.memory_space<vmem>>, vector<1x8xf32>
    %12 = vector.broadcast %11 : vector<1x8xf32> to vector<512x8xf32>
    %13 = arith.addf %10, %12 : vector<512x8xf32>
    %cst_11 = arith.constant 0.000000e+00 : f32
    %14 = vector.broadcast %cst_11 : f32 to vector<512x8xf32>
    %15 = arith.maximumf %13, %14 : vector<512x8xf32>
    %16 = arith.truncf %15 : vector<512x8xf32> to vector<512x8xbf16>
    %c0_12 = arith.constant 0 : index
    %c0_13 = arith.constant 0 : index
    %17 = vector.load %arg6[%c0_12, %c0_13] : memref<8x128xbf16, #tpu.memory_space<vmem>>, vector<8x128xbf16>
    %cst_14 = arith.constant dense<0.000000e+00> : vector<512x128xf32>
    %18 = tpu.matmul %16, %17, %cst_14 {dimension_numbers = #tpu.dot_dimension_numbers<[1], [0], [0], [1], [0, 0, 1, 1], [], []>} : vector<512x8xbf16>, vector<8x128xbf16>, vector<512x128xf32> -> vector<512x128xf32>
    %c0_15 = arith.constant 0 : index
    %c0_16 = arith.constant 0 : index
    %19 = vector.load %arg7[%c0_15, %c0_16] : memref<1x128xf32, #tpu.memory_space<vmem>>, vector<1x128xf32>
    %20 = vector.broadcast %19 : vector<1x128xf32> to vector<512x128xf32>
    %21 = arith.addf %18, %20 : vector<512x128xf32>
    %cst_17 = arith.constant dense<0xFF800000> : vector<512xf32>
    %22 = vector.multi_reduction <maximumf>, %21, %cst_17 [1] : vector<512x128xf32> to vector<512xf32>
    %23 = vector.shape_cast %22 : vector<512xf32> to vector<512x1xf32>
    %24 = vector.broadcast %23 : vector<512x1xf32> to vector<512x128xf32>
    %25 = arith.subf %21, %24 : vector<512x128xf32>
    %26 = math.exp %25 : vector<512x128xf32>
    %cst_18 = arith.constant dense<0.000000e+00> : vector<512xf32>
    %27 = vector.multi_reduction <add>, %26, %cst_18 [1] : vector<512x128xf32> to vector<512xf32>
    %28 = vector.shape_cast %27 : vector<512xf32> to vector<512x1xf32>
    %29 = tpu.reciprocal %28 {approx = true} : vector<512x1xf32> -> vector<512x1xf32>
    %30 = vector.broadcast %29 : vector<512x1xf32> to vector<512x128xf32>
    %31 = arith.mulf %26, %30 : vector<512x128xf32>
    %c0_19 = arith.constant 0 : index
    %c0_20 = arith.constant 0 : index
    %32 = vector.load %arg8[%c0_19, %c0_20] : memref<512x128xf32, #tpu.memory_space<vmem>>, vector<512x128xf32>
    tpu.vector_store %arg8[%c0_19, %c0_20], %31 {strides = array<i32>} : memref<512x128xf32, #tpu.memory_space<vmem>>, vector<512x128xf32>,
    return
  }
  func.func @transform_0(%arg0: i32) -> (i32, i32) {
    %c0_i32 = arith.constant 0 : i32
    %c0_i32_0 = arith.constant 0 : i32
    return %arg0, %c0_i32 : i32, i32
  }
  func.func @transform_1(%arg0: i32) -> (i32, i32) {
    %c0_i32 = arith.constant 0 : i32
    %c0_i32_0 = arith.constant 0 : i32
    %c0_i32_1 = arith.constant 0 : i32
    return %c0_i32, %c0_i32_0 : i32, i32
  }
  func.func @transform_2(%arg0: i32) -> (i32, i32) {
    %c0_i32 = arith.constant 0 : i32
    %c0_i32_0 = arith.constant 0 : i32
    %c0_i32_1 = arith.constant 0 : i32
    return %c0_i32, %c0_i32_0 : i32, i32
  }
  func.func @transform_3(%arg0: i32) -> (i32, i32) {
    %c0_i32 = arith.constant 0 : i32
    %c0_i32_0 = arith.constant 0 : i32
    %c0_i32_1 = arith.constant 0 : i32
    return %c0_i32, %c0_i32_0 : i32, i32
  }
  func.func @transform_4(%arg0: i32) -> (i32, i32) {
    %c0_i32 = arith.constant 0 : i32
    %c0_i32_0 = arith.constant 0 : i32
    %c0_i32_1 = arith.constant 0 : i32
    return %c0_i32, %c0_i32_0 : i32, i32
  }
  func.func @transform_5(%arg0: i32) -> (i32, i32) {
    %c0_i32 = arith.constant 0 : i32
    %c0_i32_0 = arith.constant 0 : i32
    %c0_i32_1 = arith.constant 0 : i32
    return %c0_i32, %c0_i32_0 : i32, i32
  }
  func.func @transform_6(%arg0: i32) -> (i32, i32) {
    %c0_i32 = arith.constant 0 : i32
    %c0_i32_0 = arith.constant 0 : i32
    %c0_i32_1 = arith.constant 0 : i32
    return %c0_i32, %c0_i32_0 : i32, i32
  }
  func.func @transform_7(%arg0: i32) -> (i32, i32) {
    %c0_i32 = arith.constant 0 : i32
    %c0_i32_0 = arith.constant 0 : i32
    return %arg0, %c0_i32 : i32, i32
  }
}

</mosaic_0001>

<llo_original>
// kernel: classifier_forward.1
$region0: #{classifier_forward.1}
  #allocation0 [shape = 'u32[]', space=smem, size = 0x4, offset = 0x4, fixed_abs, tag = 'smem constant byte address 0x4 - core index']
  #allocation1 [shape = 'u32[144,128]{1,0:T(1,128)}', space=vmem, size = 0x12000, scoped, tag = 'internal scratch']
  %s0 = inlined_call_operand.vmem [shape: bf16[1024,32], index: 0, kind: input, shape index: {}]
  %s1 = inlined_call_operand.vmem [shape: bf16[32,16], index: 1, kind: input, shape index: {}]
  %s2 = inlined_call_operand.vmem [shape: f32[1,16], index: 2, kind: input, shape index: {}]
  %s3 = inlined_call_operand.vmem [shape: bf16[16,8], index: 3, kind: input, shape index: {}]
  %s4 = inlined_call_operand.vmem [shape: f32[1,8], index: 4, kind: input, shape index: {}]
  %s5 = inlined_call_operand.vmem [shape: bf16[8,128], index: 5, kind: input, shape index: {}]
  %s6 = inlined_call_operand.vmem [shape: f32[1,128], index: 6, kind: input, shape index: {}]
  %s7 = inlined_call_operand.vmem [shape: f32[1024,128], index: 7, kind: output, shape index: {}]
  %s8 = sld [smem:[#allocation0]]
  $region61: #{classifier_forward.1} parent=0
    _
  %s10 = ssub.s32 1, %s8
  %s11 = scalar_select 0, %s10, %s8
  loop: start=0, step=1, limit=4
  $region2: #{classifier_forward.1} parent=0 // loop_pre_header
    _
  $region3: #{classifier_forward.1} parent=0 // loop_header
    %s13 = sphi 0, %s17
    %p14 = scmp.ge.s32.totalorder %s13, 4
    %s23 = sphi 0, %s25
    %s26 = sphi 0, %s23
    %s27 = sphi 0, %s26
    %s43 = sphi 0, %s27
    %s47 = sphi 0, %s47
    %s49 = sphi 0, %s47
    %s50 = sphi 0, %s49
    %s64 = sphi 0, %s50
    %s68 = sphi 0, %s68
    %s70 = sphi 0, %s68
    %s71 = sphi 0, %s70
    %s85 = sphi 0, %s71
    %s89 = sphi 0, %s89
    %s91 = sphi 0, %s89
    %s92 = sphi 0, %s91
    %s106 = sphi 0, %s92
    %s110 = sphi 0, %s110
    %s112 = sphi 0, %s110
    %s113 = sphi 0, %s112
    %s127 = sphi 0, %s113
    %s131 = sphi 0, %s131
    %s133 = sphi 0, %s131
    %s134 = sphi 0, %s133
    %s148 = sphi 0, %s134
    %s152 = sphi 0, %s152
    %s154 = sphi 0, %s152
    %s155 = sphi 0, %s154
    %s169 = sphi 0, %s155
    %s175 = sphi 0, %s177
    %s178 = sphi 0, %s175
    %s179 = sphi 0, %s178
    %s195 = sphi 0, %s179
  $region4: #{classifier_forward.1} parent=0 // loop_header_branch
    %16 = sbr.rel (%p14) target = $region8
  $region5: #{classifier_forward.1} parent=0 // loop_body
    %s18 = ssub.s32 %s13, 1
    %s19 = ssub.s32 %s13, 2
    %s20 = sadd.s32 %s13, 1
    %s21 = ssub.s32 %s13, %s20
    %p22 = scmp.eq.s32.totalorder %s21, 0
    %s24 = sadd.s32 %s23, 1
    %s25 = scalar_select %p22, %s23, %s24
    %p28 = pneg %p22
    %p29 = scmp.eq.s32.totalorder %s13, 1
    %p30 = por %p28, %p29
    %p31 = scmp.ne.s32.totalorder %s23, %s26
    %p32 = scmp.eq.s32.totalorder %s13, 0
    %p33 = por %p31, %p32
    %p34 = scmp.ne.s32.totalorder %s23, %s26
    %p35 = scmp.eq.s32.totalorder %s18, 1
    %p36 = por %p34, %p35
    %p37 = scmp.ne.s32.totalorder %s26, %s27
    %p38 = scmp.eq.s32.totalorder %s18, 0
    %p39 = por %p37, %p38
    %p40 = scmp.ne.s32.totalorder %s26, %s27
    %p41 = scmp.eq.s32.totalorder %s19, 1
    %p42 = por %p40, %p41
    %p44 = scmp.ne.s32.totalorder %s27, %s43
    %p45 = scmp.eq.s32.totalorder %s19, 0
    %p46 = por %p44, %p45
    %s48 = sadd.s32 %s47, 1
    %p51 = scmp.eq.s32.totalorder %s13, 1
    %p52 = scmp.ne.s32.totalorder %s47, %s49
    %p53 = scmp.eq.s32.totalorder %s13, 0
    %p54 = por %p52, %p53
    %p55 = scmp.ne.s32.totalorder %s47, %s49
    %p56 = scmp.eq.s32.totalorder %s18, 1
    %p57 = por %p55, %p56
    %p58 = scmp.ne.s32.totalorder %s49, %s50
    %p59 = scmp.eq.s32.totalorder %s18, 0
    %p60 = por %p58, %p59
    %p61 = scmp.ne.s32.totalorder %s49, %s50
    %p62 = scmp.eq.s32.totalorder %s19, 1
    %p63 = por %p61, %p62
    %p65 = scmp.ne.s32.totalorder %s50, %s64
    %p66 = scmp.eq.s32.totalorder %s19, 0
    %p67 = por %p65, %p66
    %s69 = sadd.s32 %s68, 1
    %p72 = scmp.eq.s32.totalorder %s13, 1
    %p73 = scmp.ne.s32.totalorder %s68, %s70
    %p74 = scmp.eq.s32.totalorder %s13, 0
    %p75 = por %p73, %p74
    %p76 = scmp.ne.s32.totalorder %s68, %s70
    %p77 = scmp.eq.s32.totalorder %s18, 1
    %p78 = por %p76, %p77
    %p79 = scmp.ne.s32.totalorder %s70, %s71
    %p80 = scmp.eq.s32.totalorder %s18, 0
    %p81 = por %p79, %p80
    %p82 = scmp.ne.s32.totalorder %s70, %s71
    %p83 = scmp.eq.s32.totalorder %s19, 1
    %p84 = por %p82, %p83
    %p86 = scmp.ne.s32.totalorder %s71, %s85
    %p87 = scmp.eq.s32.totalorder %s19, 0
    %p88 = por %p86, %p87
    %s90 = sadd.s32 %s89, 1
    %p93 = scmp.eq.s32.totalorder %s13, 1
    %p94 = scmp.ne.s32.totalorder %s89, %s91
    %p95 = scmp.eq.s32.totalorder %s13, 0
    %p96 = por %p94, %p95
    %p97 = scmp.ne.s32.totalorder %s89, %s91
    %p98 = scmp.eq.s32.totalorder %s18, 1
    %p99 = por %p97, %p98
    %p100 = scmp.ne.s32.totalorder %s91, %s92
    %p101 = scmp.eq.s32.totalorder %s18, 0
    %p102 = por %p100, %p101
    %p103 = scmp.ne.s32.totalorder %s91, %s92
    %p104 = scmp.eq.s32.totalorder %s19, 1
    %p105 = por %p103, %p104
    %p107 = scmp.ne.s32.totalorder %s92, %s106
    %p108 = scmp.eq.s32.totalorder %s19, 0
    %p109 = por %p107, %p108
    %s111 = sadd.s32 %s110, 1
    %p114 = scmp.eq.s32.totalorder %s13, 1
    %p115 = scmp.ne.s32.totalorder %s110, %s112
    %p116 = scmp.eq.s32.totalorder %s13, 0
    %p117 = por %p115, %p116
    %p118 = scmp.ne.s32.totalorder %s110, %s112
    %p119 = scmp.eq.s32.totalorder %s18, 1
    %p120 = por %p118, %p119
    %p121 = scmp.ne.s32.totalorder %s112, %s113
    %p122 = scmp.eq.s32.totalorder %s18, 0
    %p123 = por %p121, %p122
    %p124 = scmp.ne.s32.totalorder %s112, %s113
    %p125 = scmp.eq.s32.totalorder %s19, 1
    %p126 = por %p124, %p125
    %p128 = scmp.ne.s32.totalorder %s113, %s127
    %p129 = scmp.eq.s32.totalorder %s19, 0
    %p130 = por %p128, %p129
    %s132 = sadd.s32 %s131, 1
    %p135 = scmp.eq.s32.totalorder %s13, 1
    %p136 = scmp.ne.s32.totalorder %s131, %s133
    %p137 = scmp.eq.s32.totalorder %s13, 0
    %p138 = por %p136, %p137
    %p139 = scmp.ne.s32.totalorder %s131, %s133
    %p140 = scmp.eq.s32.totalorder %s18, 1
    %p141 = por %p139, %p140
    %p142 = scmp.ne.s32.totalorder %s133, %s134
    %p143 = scmp.eq.s32.totalorder %s18, 0
    %p144 = por %p142, %p143
    %p145 = scmp.ne.s32.totalorder %s133, %s134
    %p146 = scmp.eq.s32.totalorder %s19, 1
    %p147 = por %p145, %p146
    %p149 = scmp.ne.s32.totalorder %s134, %s148
    %p150 = scmp.eq.s32.totalorder %s19, 0
    %p151 = por %p149, %p150
    %s153 = sadd.s32 %s152, 1
    %p156 = scmp.eq.s32.totalorder %s13, 1
    %p157 = scmp.ne.s32.totalorder %s152, %s154
    %p158 = scmp.eq.s32.totalorder %s13, 0
    %p159 = por %p157, %p158
    %p160 = scmp.ne.s32.totalorder %s152, %s154
    %p161 = scmp.eq.s32.totalorder %s18, 1
    %p162 = por %p160, %p161
    %p163 = scmp.ne.s32.totalorder %s154, %s155
    %p164 = scmp.eq.s32.totalorder %s18, 0
    %p165 = por %p163, %p164
    %p166 = scmp.ne.s32.totalorder %s154, %s155
    %p167 = scmp.eq.s32.totalorder %s19, 1
    %p168 = por %p166, %p167
    %p170 = scmp.ne.s32.totalorder %s155, %s169
    %p171 = scmp.eq.s32.totalorder %s19, 0
    %p172 = por %p170, %p171
    %s173 = ssub.s32 %s13, %s20
    %p174 = scmp.eq.s32.totalorder %s173, 0
    %s176 = sadd.s32 %s175, 1
    %s177 = scalar_select %p174, %s175, %s176
    %p180 = pneg %p174
    %p181 = scmp.eq.s32.totalorder %s13, 1
    %p182 = por %p180, %p181
    %p183 = scmp.ne.s32.totalorder %s175, %s178
    %p184 = scmp.eq.s32.totalorder %s13, 0
    %p185 = por %p183, %p184
    %p186 = scmp.ne.s32.totalorder %s175, %s178
    %p187 = scmp.eq.s32.totalorder %s18, 1
    %p188 = por %p186, %p187
    %p189 = scmp.ne.s32.totalorder %s178, %s179
    %p190 = scmp.eq.s32.totalorder %s18, 0
    %p191 = por %p189, %p190
    %p192 = scmp.ne.s32.totalorder %s178, %s179
    %p193 = scmp.eq.s32.totalorder %s19, 1
    %p194 = por %p192, %p193
    %p196 = scmp.ne.s32.totalorder %s179, %s195
    %p197 = scmp.eq.s32.totalorder %s19, 0
    %p198 = por %p196, %p197
    %p199 = scmp.le.s32.totalorder 1, %s13
    %p200 = scmp.lt.s32.totalorder %s13, 3
    %p201 = pnand %p199, %p200
    %p202 = pneg %p201
    // Predicated region
    $region9: #{classifier_forward.1} parent=5 // pred_check
      _
    $region10: #{classifier_forward.1} parent=5 // pred_check_branch
      %204 = sbr.rel (%p201) target = $region12
    $region11: #{classifier_forward.1} parent=5 // pred_region
      %s205 = ssub.s32 %s13, 1
      // Predicated region
      $region13: #{classifier_forward.1} parent=11 // pred_check
        %p206 = pneg %p60
      $region14: #{classifier_forward.1} parent=11 // pred_check_branch
        %208 = sbr.rel (%p206) target = $region16
      $region15: #{classifier_forward.1} parent=11 // pred_region
        _
      $region16: #{classifier_forward.1} parent=11 // pred_fallthru
        _
      // Predicated region
      $region17: #{classifier_forward.1} parent=11 // pred_check
        %p209 = pneg %p81
      $region18: #{classifier_forward.1} parent=11 // pred_check_branch
        %211 = sbr.rel (%p209) target = $region20
      $region19: #{classifier_forward.1} parent=11 // pred_region
        _
      $region20: #{classifier_forward.1} parent=11 // pred_fallthru
        _
      // Predicated region
      $region21: #{classifier_forward.1} parent=11 // pred_check
        %p212 = pneg %p102
      $region22: #{classifier_forward.1} parent=11 // pred_check_branch
        %214 = sbr.rel (%p212) target = $region24
      $region23: #{classifier_forward.1} parent=11 // pred_region
        _
      $region24: #{classifier_forward.1} parent=11 // pred_fallthru
        _
      // Predicated region
      $region25: #{classifier_forward.1} parent=11 // pred_check
        %p215 = pneg %p123
      $region26: #{classifier_forward.1} parent=11 // pred_check_branch
        %217 = sbr.rel (%p215) target = $region28
      $region27: #{classifier_forward.1} parent=11 // pred_region
        _
      $region28: #{classifier_forward.1} parent=11 // pred_fallthru
        _
      // Predicated region
      $region29: #{classifier_forward.1} parent=11 // pred_check
        %p218 = pneg %p144
      $region30: #{classifier_forward.1} parent=11 // pred_check_branch
        %220 = sbr.rel (%p218) target = $region32
      $region31: #{classifier_forward.1} parent=11 // pred_region
        _
      $region32: #{classifier_forward.1} parent=11 // pred_fallthru
        _
      // Predicated region
      $region33: #{classifier_forward.1} parent=11 // pred_check
        %p221 = pneg %p165
      $region34: #{classifier_forward.1} parent=11 // pred_check_branch
        %223 = sbr.rel (%p221) target = $region36
      $region35: #{classifier_forward.1} parent=11 // pred_region
        _
      $region36: #{classifier_forward.1} parent=11 // pred_fallthru
        _
    $region12: #{classifier_forward.1} parent=5 // pred_fallthru
      _
    %p224 = scmp.lt.s32.totalorder %s13, 2
    // Predicated region
    $region37: #{classifier_forward.1} parent=5 // pred_check
      %p225 = pneg %p224
    $region38: #{classifier_forward.1} parent=5 // pred_check_branch
      %227 = sbr.rel (%p225) target = $region40
    $region39: #{classifier_forward.1} parent=5 // pred_region
      // Predicated region
      $region41: #{classifier_forward.1} parent=39 // pred_check
        %p228 = pneg %p33
      $region42: #{classifier_forward.1} parent=39 // pred_check_branch
        %230 = sbr.rel (%p228) target = $region44
      $region43: #{classifier_forward.1} parent=39 // pred_region
        %s231 = smul.u32 64, %s13
        %p232 = scmp.lt.s32.totalorder %s231, 127
        %s233 = scalar_select %p232, %s231, 127
        %s234 = smul.addr %s233, 4
        %s235 = scalar_lea.vmem %s0, %s234
        %s236 = smul.u32 64, %s13
      $region44: #{classifier_forward.1} parent=39 // pred_fallthru
        _
    $region40: #{classifier_forward.1} parent=5 // pred_fallthru
      _
    %p237 = scmp.le.s32.totalorder 1, %s13
    %p238 = scmp.lt.s32.totalorder %s13, 3
    %p239 = pnand %p237, %p238
    %p240 = pneg %p239
    // Predicated region
    $region45: #{classifier_forward.1} parent=5 // pred_check
      _
    $region46: #{classifier_forward.1} parent=5 // pred_check_branch
      %242 = sbr.rel (%p239) target = $region48
    $region47: #{classifier_forward.1} parent=5 // pred_region
      %s243 = ssub.s32 %s13, 1
      %s244 = smul.u32 64, %s18
      %p245 = scmp.lt.s32.totalorder %s244, 127
      %s246 = scalar_select %p245, %s244, 127
      %s247 = smul.addr %s246, 4
      %s248 = scalar_lea.vmem %s0, %s247
      %p249 = pneg %p39
      %p250 = pneg %p36
      %p251 = pneg %p60
      %p252 = pneg %p57
      %p253 = pneg %p81
      %p254 = pneg %p78
      %p255 = pneg %p102
      %p256 = pneg %p99
      %p257 = pneg %p123
      %p258 = pneg %p120
      %p259 = pneg %p144
      %p260 = pneg %p141
      %p261 = pneg %p165
      %p262 = pneg %p162
      %p263 = pneg %p191
      %p264 = pneg %p188
      %s265 = smul.u32 64, %s18
      %p266 = scmp.lt.s32.totalorder %s265, 127
      %s267 = scalar_select %p266, %s265, 127
      %s268 = smul.addr %s267, 8
      %s269 = scalar_lea.vmem %s7, %s268
      %s270 = smul.u32 64, %s18
      %p271 = scmp.lt.s32.totalorder %s270, 127
      %s272 = scalar_select %p271, %s270, 127
      %s273 = smul.addr %s272, 4
      %s274 = scalar_lea.vmem %s0, %s273
      %s275 = smul.u32 64, %s18
      %s276 = smul.u32 64, %s18
      %p277 = scmp.lt.s32.totalorder %s276, 127
      %s278 = scalar_select %p277, %s276, 127
      %s279 = smul.addr %s278, 8
      %s280 = scalar_lea.vmem %s7, %s279
      %s281 = smul.u32 64, %s18
      %v283 = vld [vmem:[%s274] sm:$0xf]
      %v284 = vld [vmem:[%s274 + $0x4] sm:$0xf]
      %v285 = vld [vmem:[%s274 + $0x8] sm:$0xf]
      %v286 = vld [vmem:[%s274 + $0xc] sm:$0xf]
      %v287 = vld [vmem:[%s274 + $0x10] sm:$0xf]
      %v288 = vld [vmem:[%s274 + $0x14] sm:$0xf]
      %v289 = vld [vmem:[%s274 + $0x18] sm:$0xf]
      %v290 = vld [vmem:[%s274 + $0x1c] sm:$0xf]
      %v291 = vld [vmem:[%s274 + $0x20] sm:$0xf]
      %v292 = vld [vmem:[%s274 + $0x24] sm:$0xf]
      %v293 = vld [vmem:[%s274 + $0x28] sm:$0xf]
      %v294 = vld [vmem:[%s274 + $0x2c] sm:$0xf]
      %v295 = vld [vmem:[%s274 + $0x30] sm:$0xf]
      %v296 = vld [vmem:[%s274 + $0x34] sm:$0xf]
      %v297 = vld [vmem:[%s274 + $0x38] sm:$0xf]
      %v298 = vld [vmem:[%s274 + $0x3c] sm:$0xf]
      %v299 = vld [vmem:[%s274 + $0x40] sm:$0xf]
      %v300 = vld [vmem:[%s274 + $0x44] sm:$0xf]
      %v301 = vld [vmem:[%s274 + $0x48] sm:$0xf]
      %v302 = vld [vmem:[%s274 + $0x4c] sm:$0xf]
      %v303 = vld [vmem:[%s274 + $0x50] sm:$0xf]
      %v304 = vld [vmem:[%s274 + $0x54] sm:$0xf]
      %v305 = vld [vmem:[%s274 + $0x58] sm:$0xf]
      %v306 = vld [vmem:[%s274 + $0x5c] sm:$0xf]
      %v307 = vld [vmem:[%s274 + $0x60] sm:$0xf]
      %v308 = vld [vmem:[%s274 + $0x64] sm:$0xf]
      %v309 = vld [vmem:[%s274 + $0x68] sm:$0xf]
      %v310 = vld [vmem:[%s274 + $0x6c] sm:$0xf]
      %v311 = vld [vmem:[%s274 + $0x70] sm:$0xf]
      %v312 = vld [vmem:[%s274 + $0x74] sm:$0xf]
      %v313 = vld [vmem:[%s274 + $0x78] sm:$0xf]
      %v314 = vld [vmem:[%s274 + $0x7c] sm:$0xf]
      %v315 = vld [vmem:[%s274 + $0x80] sm:$0xf]
      %v316 = vld [vmem:[%s274 + $0x84] sm:$0xf]
      %v317 = vld [vmem:[%s274 + $0x88] sm:$0xf]
      %v318 = vld [vmem:[%s274 + $0x8c] sm:$0xf]
      %v319 = vld [vmem:[%s274 + $0x90] sm:$0xf]
      %v320 = vld [vmem:[%s274 + $0x94] sm:$0xf]
      %v321 = vld [vmem:[%s274 + $0x98] sm:$0xf]
      %v322 = vld [vmem:[%s274 + $0x9c] sm:$0xf]
      %v323 = vld [vmem:[%s274 + $0xa0] sm:$0xf]
      %v324 = vld [vmem:[%s274 + $0xa4] sm:$0xf]
      %v325 = vld [vmem:[%s274 + $0xa8] sm:$0xf]
      %v326 = vld [vmem:[%s274 + $0xac] sm:$0xf]
      %v327 = vld [vmem:[%s274 + $0xb0] sm:$0xf]
      %v328 = vld [vmem:[%s274 + $0xb4] sm:$0xf]
      %v329 = vld [vmem:[%s274 + $0xb8] sm:$0xf]
      %v330 = vld [vmem:[%s274 + $0xbc] sm:$0xf]
      %v331 = vld [vmem:[%s274 + $0xc0] sm:$0xf]
      %v332 = vld [vmem:[%s274 + $0xc4] sm:$0xf]
      %v333 = vld [vmem:[%s274 + $0xc8] sm:$0xf]
      %v334 = vld [vmem:[%s274 + $0xcc] sm:$0xf]
      %v335 = vld [vmem:[%s274 + $0xd0] sm:$0xf]
      %v336 = vld [vmem:[%s274 + $0xd4] sm:$0xf]
      %v337 = vld [vmem:[%s274 + $0xd8] sm:$0xf]
      %v338 = vld [vmem:[%s274 + $0xdc] sm:$0xf]
      %v339 = vld [vmem:[%s274 + $0xe0] sm:$0xf]
      %v340 = vld [vmem:[%s274 + $0xe4] sm:$0xf]
      %v341 = vld [vmem:[%s274 + $0xe8] sm:$0xf]
      %v342 = vld [vmem:[%s274 + $0xec] sm:$0xf]
      %v343 = vld [vmem:[%s274 + $0xf0] sm:$0xf]
      %v344 = vld [vmem:[%s274 + $0xf4] sm:$0xf]
      %v345 = vld [vmem:[%s274 + $0xf8] sm:$0xf]
      %v346 = vld [vmem:[%s274 + $0xfc] sm:$0xf]
      %v347 = vld [vmem:[%s1] sm:$0xf]
      %v348 = vld [vmem:[%s1 + $0x4] sm:$0xf]
      %v349 = vld [vmem:[%s1 + $0x8] sm:$0xf]
      %v350 = vld [vmem:[%s1 + $0xc] sm:$0xf]
      %v351 = vld [vmem:[%s2] sm:$0x1]
      %v353 = vlaneseq
      %v354 = vshrl.u32 %v353, 7
      %v355 = vsub.s32 0, %v354
      %v356 = vrot.slane %v351, %v355
      %v422 = vunpack.c.l.b16 %v283
      %v423 = vunpack.c.l.b16 %v284
      %v424 = vunpack.c.l.b16 %v285
      %v425 = vunpack.c.l.b16 %v286
      %v426 = vunpack.c.l.b16 %v287
      %v427 = vunpack.c.l.b16 %v288
      %v428 = vunpack.c.l.b16 %v289
      %v429 = vunpack.c.l.b16 %v290
      %v430 = vunpack.c.l.b16 %v291
      %v431 = vunpack.c.l.b16 %v292
      %v432 = vunpack.c.l.b16 %v293
      %v433 = vunpack.c.l.b16 %v294
      %v434 = vunpack.c.l.b16 %v295
      %v435 = vunpack.c.l.b16 %v296
      %v436 = vunpack.c.l.b16 %v297
      %v437 = vunpack.c.l.b16 %v298
      %v438 = vunpack.c.l.b16 %v299
      %v439 = vunpack.c.l.b16 %v300
      %v440 = vunpack.c.l.b16 %v301
      %v441 = vunpack.c.l.b16 %v302
      %v442 = vunpack.c.l.b16 %v303
      %v443 = vunpack.c.l.b16 %v304
      %v444 = vunpack.c.l.b16 %v305
      %v445 = vunpack.c.l.b16 %v306
      %v446 = vunpack.c.l.b16 %v307
      %v447 = vunpack.c.l.b16 %v308
      %v448 = vunpack.c.l.b16 %v309
      %v449 = vunpack.c.l.b16 %v310
      %v450 = vunpack.c.l.b16 %v311
      %v451 = vunpack.c.l.b16 %v312
      %v452 = vunpack.c.l.b16 %v313
      %v453 = vunpack.c.l.b16 %v314
      %v454 = vunpack.c.l.b16 %v315
      %v455 = vunpack.c.l.b16 %v316
      %v456 = vunpack.c.l.b16 %v317
      %v457 = vunpack.c.l.b16 %v318
      %v458 = vunpack.c.l.b16 %v319
      %v459 = vunpack.c.l.b16 %v320
      %v460 = vunpack.c.l.b16 %v321
      %v461 = vunpack.c.l.b16 %v322
      %v462 = vunpack.c.l.b16 %v323
      %v463 = vunpack.c.l.b16 %v324
      %v464 = vunpack.c.l.b16 %v325
      %v465 = vunpack.c.l.b16 %v326
      %v466 = vunpack.c.l.b16 %v327
      %v467 = vunpack.c.l.b16 %v328
      %v468 = vunpack.c.l.b16 %v329
      %v469 = vunpack.c.l.b16 %v330
      %v470 = vunpack.c.l.b16 %v331
      %v471 = vunpack.c.l.b16 %v332
      %v472 = vunpack.c.l.b16 %v333
      %v473 = vunpack.c.l.b16 %v334
      %v474 = vunpack.c.l.b16 %v335
      %v475 = vunpack.c.l.b16 %v336
      %v476 = vunpack.c.l.b16 %v337
      %v477 = vunpack.c.l.b16 %v338
      %v478 = vunpack.c.l.b16 %v339
      %v479 = vunpack.c.l.b16 %v340
      %v480 = vunpack.c.l.b16 %v341
      %v481 = vunpack.c.l.b16 %v342
      %v482 = vunpack.c.l.b16 %v343
      %v483 = vunpack.c.l.b16 %v344
      %v484 = vunpack.c.l.b16 %v345
      %v485 = vunpack.c.l.b16 %v346
      %v486 = vpack.c.b16 %v423, %v422
      %v487 = vpack.c.b16 %v425, %v424
      %v488 = vpack.c.b16 %v427, %v426
      %v489 = vpack.c.b16 %v429, %v428
      %v490 = vpack.c.b16 %v431, %v430
      %v491 = vpack.c.b16 %v433, %v432
      %v492 = vpack.c.b16 %v435, %v434
      %v493 = vpack.c.b16 %v437, %v436
      %v494 = vpack.c.b16 %v439, %v438
      %v495 = vpack.c.b16 %v441, %v440
      %v496 = vpack.c.b16 %v443, %v442
      %v497 = vpack.c.b16 %v445, %v444
      %v498 = vpack.c.b16 %v447, %v446
      %v499 = vpack.c.b16 %v449, %v448
      %v500 = vpack.c.b16 %v451, %v450
      %v501 = vpack.c.b16 %v453, %v452
      %v502 = vpack.c.b16 %v455, %v454
      %v503 = vpack.c.b16 %v457, %v456
      %v504 = vpack.c.b16 %v459, %v458
      %v505 = vpack.c.b16 %v461, %v460
      %v506 = vpack.c.b16 %v463, %v462
      %v507 = vpack.c.b16 %v465, %v464
      %v508 = vpack.c.b16 %v467, %v466
      %v509 = vpack.c.b16 %v469, %v468
      %v510 = vpack.c.b16 %v471, %v470
      %v511 = vpack.c.b16 %v473, %v472
      %v512 = vpack.c.b16 %v475, %v474
      %v513 = vpack.c.b16 %v477, %v476
      %v514 = vpack.c.b16 %v479, %v478
      %v515 = vpack.c.b16 %v481, %v480
      %v516 = vpack.c.b16 %v483, %v482
      %v517 = vpack.c.b16 %v485, %v484
      %v522 = vunpack.c.l.b16 %v347
      %v523 = vunpack.c.l.b16 %v348
      %v524 = vunpack.c.l.b16 %v349
      %v525 = vunpack.c.l.b16 %v350
      %v526 = vpack.c.b16 %v523, %v522
      %v527 = vpack.c.b16 %v525, %v524
      %vm530 = vcmask 261120
      %v532 = vsel %vm530, %v486, 0
      %v535 = vsel %vm530, %v487, 0
      %v538 = vsel %vm530, %v488, 0
      %v541 = vsel %vm530, %v489, 0
      %v544 = vsel %vm530, %v490, 0
      %v547 = vsel %vm530, %v491, 0
      %v550 = vsel %vm530, %v492, 0
      %v553 = vsel %vm530, %v493, 0
      %v556 = vsel %vm530, %v494, 0
      %v559 = vsel %vm530, %v495, 0
      %v562 = vsel %vm530, %v496, 0
      %v565 = vsel %vm530, %v497, 0
      %v568 = vsel %vm530, %v498, 0
      %v571 = vsel %vm530, %v499, 0
      %v574 = vsel %vm530, %v500, 0
      %v577 = vsel %vm530, %v501, 0
      %v580 = vsel %vm530, %v502, 0
      %v583 = vsel %vm530, %v503, 0
      %v586 = vsel %vm530, %v504, 0
      %v589 = vsel %vm530, %v505, 0
      %v592 = vsel %vm530, %v506, 0
      %v595 = vsel %vm530, %v507, 0
      %v598 = vsel %vm530, %v508, 0
      %v601 = vsel %vm530, %v509, 0
      %v604 = vsel %vm530, %v510, 0
      %v607 = vsel %vm530, %v511, 0
      %v610 = vsel %vm530, %v512, 0
      %v613 = vsel %vm530, %v513, 0
      %v616 = vsel %vm530, %v514, 0
      %v619 = vsel %vm530, %v515, 0
      %v622 = vsel %vm530, %v516, 0
      %v625 = vsel %vm530, %v517, 0
      %627 = vmatprep.subr.bf16.mxu0 0
      %628 = vmatpush1.bf16.msra.mxu0 %v526
      %629 = vmatprep.subr.bf16.mxu0 0
      %630 = vmatpush1.bf16.msra.mxu0 %v527
      %631 = vmatprep.subr.bf16.mxu0 0
      %632 = vmatpush1.bf16.msra.mxu0 0
      %633 = vmatprep.subr.bf16.mxu0 0
      %634 = vmatpush1.bf16.msra.mxu0 0
      %635 = vmatprep.subr.bf16.mxu0 0
      %636 = vmatpush1.bf16.msra.mxu0 0
      %637 = vmatprep.subr.bf16.mxu0 0
      %638 = vmatpush1.bf16.msra.mxu0 0
      %639 = vmatprep.subr.bf16.mxu0 0
      %640 = vmatpush1.bf16.msra.mxu0 0
      %641 = vmatprep.subr.bf16.mxu0 0
      %642 = vmatpush1.bf16.msra.mxu0 0
      %643 = vmatprep.subr.bf16.mxu0 0
      %644 = vmatpush1.bf16.msra.mxu0 0
      %645 = vmatprep.subr.bf16.mxu0 0
      %646 = vmatpush1.bf16.msra.mxu0 0
      %647 = vmatprep.subr.bf16.mxu0 0
      %648 = vmatpush1.bf16.msra.mxu0 0
      %649 = vmatprep.subr.bf16.mxu0 0
      %650 = vmatpush1.bf16.msra.mxu0 0
      %651 = vmatprep.subr.bf16.mxu0 0
      %652 = vmatpush1.bf16.msra.mxu0 0
      %653 = vmatprep.subr.bf16.mxu0 0
      %654 = vmatpush1.bf16.msra.mxu0 0
      %655 = vmatprep.subr.bf16.mxu0 0
      %656 = vmatpush1.bf16.msra.mxu0 0
      %657 = vmatprep.subr.bf16.mxu0 0
      %658 = vmatpush1.bf16.msra.mxu0 0
      %659 = vmatprep.mubr.bf16.mxu0 0
      %660 = vmatmul.mubr.bf16.gmra.mrb[0].mxu0 %v532
      %v661 = vpop.f32.mrb[0].mxu0
      %v662 = vadd.f32 %v356, %v661
      %v663 = vpop.f32.mrb[0].mxu0
      %v664 = vpop.f32.mrb[0].mxu0
      %v665 = vadd.f32 %v356, %v664
      %v666 = vpop.f32.mrb[0].mxu0
      %667 = vmatprep.mubr.bf16.mxu0 0
      %668 = vmatmul.mubr.bf16.gmra.mrb[0].mxu0 %v535
      %v669 = vpop.f32.mrb[0].mxu0
      %v670 = vadd.f32 %v356, %v669
      %v671 = vpop.f32.mrb[0].mxu0
      %v672 = vpop.f32.mrb[0].mxu0
      %v673 = vadd.f32 %v356, %v672
      %v674 = vpop.f32.mrb[0].mxu0
      %675 = vmatprep.mubr.bf16.mxu0 0
      %676 = vmatmul.mubr.bf16.gmra.mrb[0].mxu0 %v538
      %v677 = vpop.f32.mrb[0].mxu0
      %v678 = vadd.f32 %v356, %v677
      %v679 = vpop.f32.mrb[0].mxu0
      %v680 = vpop.f32.mrb[0].mxu0
      %v681 = vadd.f32 %v356, %v680
      %v682 = vpop.f32.mrb[0].mxu0
      %683 = vmatprep.mubr.bf16.mxu0 0
      %684 = vmatmul.mubr.bf16.gmra.mrb[0].mxu0 %v541
      %v685 = vpop.f32.mrb[0].mxu0
      %v686 = vadd.f32 %v356, %v685
      %v687 = vpop.f32.mrb[0].mxu0
      %v688 = vpop.f32.mrb[0].mxu0
      %v689 = vadd.f32 %v356, %v688
      %v690 = vpop.f32.mrb[0].mxu0
      %691 = vmatprep.mubr.bf16.mxu0 0
      %692 = vmatmul.mubr.bf16.gmra.mrb[0].mxu0 %v544
      %v693 = vpop.f32.mrb[0].mxu0
      %v694 = vadd.f32 %v356, %v693
      %v695 = vpop.f32.mrb[0].mxu0
      %v696 = vpop.f32.mrb[0].mxu0
      %v697 = vadd.f32 %v356, %v696
      %v698 = vpop.f32.mrb[0].mxu0
      %699 = vmatprep.mubr.bf16.mxu0 0
      %700 = vmatmul.mubr.bf16.gmra.mrb[0].mxu0 %v547
      %v701 = vpop.f32.mrb[0].mxu0
      %v702 = vadd.f32 %v356, %v701
      %v703 = vpop.f32.mrb[0].mxu0
      %v704 = vpop.f32.mrb[0].mxu0
      %v705 = vadd.f32 %v356, %v704
      %v706 = vpop.f32.mrb[0].mxu0
      %707 = vmatprep.mubr.bf16.mxu0 0
      %708 = vmatmul.mubr.bf16.gmra.mrb[0].mxu0 %v550
      %v709 = vpop.f32.mrb[0].mxu0
      %v710 = vadd.f32 %v356, %v709
      %v711 = vpop.f32.mrb[0].mxu0
      %v712 = vpop.f32.mrb[0].mxu0
      %v713 = vadd.f32 %v356, %v712
      %v714 = vpop.f32.mrb[0].mxu0
      %715 = vmatprep.mubr.bf16.mxu0 0
      %716 = vmatmul.mubr.bf16.gmra.mrb[0].mxu0 %v553
      %v717 = vpop.f32.mrb[0].mxu0
      %v718 = vadd.f32 %v356, %v717
      %v719 = vpop.f32.mrb[0].mxu0
      %v720 = vpop.f32.mrb[0].mxu0
      %v721 = vadd.f32 %v356, %v720
      %v722 = vpop.f32.mrb[0].mxu0
      %723 = vmatprep.mubr.bf16.mxu0 0
      %724 = vmatmul.mubr.bf16.gmra.mrb[0].mxu0 %v556
      %v725 = vpop.f32.mrb[0].mxu0
      %v726 = vadd.f32 %v356, %v725
      %v727 = vpop.f32.mrb[0].mxu0
      %v728 = vpop.f32.mrb[0].mxu0
      %v729 = vadd.f32 %v356, %v728
      %v730 = vpop.f32.mrb[0].mxu0
      %731 = vmatprep.mubr.bf16.mxu0 0
      %732 = vmatmul.mubr.bf16.gmra.mrb[0].mxu0 %v559
      %v733 = vpop.f32.mrb[0].mxu0
      %v734 = vadd.f32 %v356, %v733
      %v735 = vpop.f32.mrb[0].mxu0
      %v736 = vpop.f32.mrb[0].mxu0
      %v737 = vadd.f32 %v356, %v736
      %v738 = vpop.f32.mrb[0].mxu0
      %739 = vmatprep.mubr.bf16.mxu0 0
      %740 = vmatmul.mubr.bf16.gmra.mrb[0].mxu0 %v562
      %v741 = vpop.f32.mrb[0].mxu0
      %v742 = vadd.f32 %v356, %v741
      %v743 = vpop.f32.mrb[0].mxu0
      %v744 = vpop.f32.mrb[0].mxu0
      %v745 = vadd.f32 %v356, %v744
      %v746 = vpop.f32.mrb[0].mxu0
      %747 = vmatprep.mubr.bf16.mxu0 0
      %748 = vmatmul.mubr.bf16.gmra.mrb[0].mxu0 %v565
      %v749 = vpop.f32.mrb[0].mxu0
      %v750 = vadd.f32 %v356, %v749
      %v751 = vpop.f32.mrb[0].mxu0
      %v752 = vpop.f32.mrb[0].mxu0
      %v753 = vadd.f32 %v356, %v752
      %v754 = vpop.f32.mrb[0].mxu0
      %755 = vmatprep.mubr.bf16.mxu0 0
      %756 = vmatmul.mubr.bf16.gmra.mrb[0].mxu0 %v568
      %v757 = vpop.f32.mrb[0].mxu0
      %v758 = vadd.f32 %v356, %v757
      %v759 = vpop.f32.mrb[0].mxu0
      %v760 = vpop.f32.mrb[0].mxu0
      %v761 = vadd.f32 %v356, %v760
      %v762 = vpop.f32.mrb[0].mxu0
      %763 = vmatprep.mubr.bf16.mxu0 0
      %764 = vmatmul.mubr.bf16.gmra.mrb[0].mxu0 %v571
      %v765 = vpop.f32.mrb[0].mxu0
      %v766 = vadd.f32 %v356, %v765
      %v767 = vpop.f32.mrb[0].mxu0
      %v768 = vpop.f32.mrb[0].mxu0
      %v769 = vadd.f32 %v356, %v768
      %v770 = vpop.f32.mrb[0].mxu0
      %771 = vmatprep.mubr.bf16.mxu0 0
      %772 = vmatmul.mubr.bf16.gmra.mrb[0].mxu0 %v574
      %v773 = vpop.f32.mrb[0].mxu0
      %v774 = vadd.f32 %v356, %v773
      %v775 = vpop.f32.mrb[0].mxu0
      %v776 = vpop.f32.mrb[0].mxu0
      %v777 = vadd.f32 %v356, %v776
      %v778 = vpop.f32.mrb[0].mxu0
      %779 = vmatprep.mubr.bf16.mxu0 0
      %780 = vmatmul.mubr.bf16.gmra.mrb[0].mxu0 %v577
      %v781 = vpop.f32.mrb[0].mxu0
      %v782 = vadd.f32 %v356, %v781
      %v783 = vpop.f32.mrb[0].mxu0
      %v784 = vpop.f32.mrb[0].mxu0
      %v785 = vadd.f32 %v356, %v784
      %v786 = vpop.f32.mrb[0].mxu0
      %787 = vmatprep.mubr.bf16.mxu0 0
      %788 = vmatmul.mubr.bf16.gmra.mrb[0].mxu0 %v580
      %v789 = vpop.f32.mrb[0].mxu0
      %v790 = vadd.f32 %v356, %v789
      %v791 = vpop.f32.mrb[0].mxu0
      %v792 = vpop.f32.mrb[0].mxu0
      %v793 = vadd.f32 %v356, %v792
      %v794 = vpop.f32.mrb[0].mxu0
      %795 = vmatprep.mubr.bf16.mxu0 0
      %796 = vmatmul.mubr.bf16.gmra.mrb[0].mxu0 %v583
      %v797 = vpop.f32.mrb[0].mxu0
      %v798 = vadd.f32 %v356, %v797
      %v799 = vpop.f32.mrb[0].mxu0
      %v800 = vpop.f32.mrb[0].mxu0
      %v801 = vadd.f32 %v356, %v800
      %v802 = vpop.f32.mrb[0].mxu0
      %803 = vmatprep.mubr.bf16.mxu0 0
      %804 = vmatmul.mubr.bf16.gmra.mrb[0].mxu0 %v586
      %v805 = vpop.f32.mrb[0].mxu0
      %v806 = vadd.f32 %v356, %v805
      %v807 = vpop.f32.mrb[0].mxu0
      %v808 = vpop.f32.mrb[0].mxu0
      %v809 = vadd.f32 %v356, %v808
      %v810 = vpop.f32.mrb[0].mxu0
      %811 = vmatprep.mubr.bf16.mxu0 0
      %812 = vmatmul.mubr.bf16.gmra.mrb[0].mxu0 %v589
      %v813 = vpop.f32.mrb[0].mxu0
      %v814 = vadd.f32 %v356, %v813
      %v815 = vpop.f32.mrb[0].mxu0
      %v816 = vpop.f32.mrb[0].mxu0
      %v817 = vadd.f32 %v356, %v816
      %v818 = vpop.f32.mrb[0].mxu0
      %819 = vmatprep.mubr.bf16.mxu0 0
      %820 = vmatmul.mubr.bf16.gmra.mrb[0].mxu0 %v592
      %v821 = vpop.f32.mrb[0].mxu0
      %v822 = vadd.f32 %v356, %v821
      %v823 = vpop.f32.mrb[0].mxu0
      %v824 = vpop.f32.mrb[0].mxu0
      %v825 = vadd.f32 %v356, %v824
      %v826 = vpop.f32.mrb[0].mxu0
      %827 = vmatprep.mubr.bf16.mxu0 0
      %828 = vmatmul.mubr.bf16.gmra.mrb[0].mxu0 %v595
      %v829 = vpop.f32.mrb[0].mxu0
      %v830 = vadd.f32 %v356, %v829
      %v831 = vpop.f32.mrb[0].mxu0
      %v832 = vpop.f32.mrb[0].mxu0
      %v833 = vadd.f32 %v356, %v832
      %v834 = vpop.f32.mrb[0].mxu0
      %835 = vmatprep.mubr.bf16.mxu0 0
      %836 = vmatmul.mubr.bf16.gmra.mrb[0].mxu0 %v598
      %v837 = vpop.f32.mrb[0].mxu0
      %v838 = vadd.f32 %v356, %v837
      %v839 = vpop.f32.mrb[0].mxu0
      %v840 = vpop.f32.mrb[0].mxu0
      %v841 = vadd.f32 %v356, %v840
      %v842 = vpop.f32.mrb[0].mxu0
      %843 = vmatprep.mubr.bf16.mxu0 0
      %844 = vmatmul.mubr.bf16.gmra.mrb[0].mxu0 %v601
      %v845 = vpop.f32.mrb[0].mxu0
      %v846 = vadd.f32 %v356, %v845
      %v847 = vpop.f32.mrb[0].mxu0
      %v848 = vpop.f32.mrb[0].mxu0
      %v849 = vadd.f32 %v356, %v848
      %v850 = vpop.f32.mrb[0].mxu0
      %851 = vmatprep.mubr.bf16.mxu0 0
      %852 = vmatmul.mubr.bf16.gmra.mrb[0].mxu0 %v604
      %v853 = vpop.f32.mrb[0].mxu0
      %v854 = vadd.f32 %v356, %v853
      %v855 = vpop.f32.mrb[0].mxu0
      %v856 = vpop.f32.mrb[0].mxu0
      %v857 = vadd.f32 %v356, %v856
      %v858 = vpop.f32.mrb[0].mxu0
      %859 = vmatprep.mubr.bf16.mxu0 0
      %860 = vmatmul.mubr.bf16.gmra.mrb[0].mxu0 %v607
      %v861 = vpop.f32.mrb[0].mxu0
      %v862 = vadd.f32 %v356, %v861
      %v863 = vpop.f32.mrb[0].mxu0
      %v864 = vpop.f32.mrb[0].mxu0
      %v865 = vadd.f32 %v356, %v864
      %v866 = vpop.f32.mrb[0].mxu0
      %867 = vmatprep.mubr.bf16.mxu0 0
      %868 = vmatmul.mubr.bf16.gmra.mrb[0].mxu0 %v610
      %v869 = vpop.f32.mrb[0].mxu0
      %v870 = vadd.f32 %v356, %v869
      %v871 = vpop.f32.mrb[0].mxu0
      %v872 = vpop.f32.mrb[0].mxu0
      %v873 = vadd.f32 %v356, %v872
      %v874 = vpop.f32.mrb[0].mxu0
      %875 = vmatprep.mubr.bf16.mxu0 0
      %876 = vmatmul.mubr.bf16.gmra.mrb[0].mxu0 %v613
      %v877 = vpop.f32.mrb[0].mxu0
      %v878 = vadd.f32 %v356, %v877
      %v879 = vpop.f32.mrb[0].mxu0
      %v880 = vpop.f32.mrb[0].mxu0
      %v881 = vadd.f32 %v356, %v880
      %v882 = vpop.f32.mrb[0].mxu0
      %883 = vmatprep.mubr.bf16.mxu0 0
      %884 = vmatmul.mubr.bf16.gmra.mrb[0].mxu0 %v616
      %v885 = vpop.f32.mrb[0].mxu0
      %v886 = vadd.f32 %v356, %v885
      %v887 = vpop.f32.mrb[0].mxu0
      %v888 = vpop.f32.mrb[0].mxu0
      %v889 = vadd.f32 %v356, %v888
      %v890 = vpop.f32.mrb[0].mxu0
      %891 = vmatprep.mubr.bf16.mxu0 0
      %892 = vmatmul.mubr.bf16.gmra.mrb[0].mxu0 %v619
      %v893 = vpop.f32.mrb[0].mxu0
      %v894 = vadd.f32 %v356, %v893
      %v895 = vpop.f32.mrb[0].mxu0
      %v896 = vpop.f32.mrb[0].mxu0
      %v897 = vadd.f32 %v356, %v896
      %v898 = vpop.f32.mrb[0].mxu0
      %899 = vmatprep.mubr.bf16.mxu0 0
      %900 = vmatmul.mubr.bf16.gmra.mrb[0].mxu0 %v622
      %v901 = vpop.f32.mrb[0].mxu0
      %v902 = vadd.f32 %v356, %v901
      %v903 = vpop.f32.mrb[0].mxu0
      %v904 = vpop.f32.mrb[0].mxu0
      %v905 = vadd.f32 %v356, %v904
      %v906 = vpop.f32.mrb[0].mxu0
      %907 = vmatprep.mubr.bf16.mxu0 0
      %908 = vmatmul.mubr.bf16.gmra.mrb[0].mxu0 %v625
      %v909 = vpop.f32.mrb[0].mxu0
      %v910 = vadd.f32 %v356, %v909
      %v911 = vpop.f32.mrb[0].mxu0
      %v912 = vpop.f32.mrb[0].mxu0
      %v913 = vadd.f32 %v356, %v912
      %v914 = vpop.f32.mrb[0].mxu0
      %915 = vdwg.mxu0
      %v916 = vmax.f32 %v662, 0.0
      %v917 = vmax.f32 %v665, 0.0
      %v918 = vmax.f32 %v670, 0.0
      %v919 = vmax.f32 %v673, 0.0
      %v920 = vmax.f32 %v678, 0.0
      %v921 = vmax.f32 %v681, 0.0
      %v922 = vmax.f32 %v686, 0.0
      %v923 = vmax.f32 %v689, 0.0
      %v924 = vmax.f32 %v694, 0.0
      %v925 = vmax.f32 %v697, 0.0
      %v926 = vmax.f32 %v702, 0.0
      %v927 = vmax.f32 %v705, 0.0
      %v928 = vmax.f32 %v710, 0.0
      %v929 = vmax.f32 %v713, 0.0
      %v930 = vmax.f32 %v718, 0.0
      %v931 = vmax.f32 %v721, 0.0
      %v932 = vmax.f32 %v726, 0.0
      %v933 = vmax.f32 %v729, 0.0
      %v934 = vmax.f32 %v734, 0.0
      %v935 = vmax.f32 %v737, 0.0
      %v936 = vmax.f32 %v742, 0.0
      %v937 = vmax.f32 %v745, 0.0
      %v938 = vmax.f32 %v750, 0.0
      %v939 = vmax.f32 %v753, 0.0
      %v940 = vmax.f32 %v758, 0.0
      %v941 = vmax.f32 %v761, 0.0
      %v942 = vmax.f32 %v766, 0.0
      %v943 = vmax.f32 %v769, 0.0
      %v944 = vmax.f32 %v774, 0.0
      %v945 = vmax.f32 %v777, 0.0
      %v946 = vmax.f32 %v782, 0.0
      %v947 = vmax.f32 %v785, 0.0
      %v948 = vmax.f32 %v790, 0.0
      %v949 = vmax.f32 %v793, 0.0
      %v950 = vmax.f32 %v798, 0.0
      %v951 = vmax.f32 %v801, 0.0
      %v952 = vmax.f32 %v806, 0.0
      %v953 = vmax.f32 %v809, 0.0
      %v954 = vmax.f32 %v814, 0.0
      %v955 = vmax.f32 %v817, 0.0
      %v956 = vmax.f32 %v822, 0.0
      %v957 = vmax.f32 %v825, 0.0
      %v958 = vmax.f32 %v830, 0.0
      %v959 = vmax.f32 %v833, 0.0
      %v960 = vmax.f32 %v838, 0.0
      %v961 = vmax.f32 %v841, 0.0
      %v962 = vmax.f32 %v846, 0.0
      %v963 = vmax.f32 %v849, 0.0
      %v964 = vmax.f32 %v854, 0.0
      %v965 = vmax.f32 %v857, 0.0
      %v966 = vmax.f32 %v862, 0.0
      %v967 = vmax.f32 %v865, 0.0
      %v968 = vmax.f32 %v870, 0.0
      %v969 = vmax.f32 %v873, 0.0
      %v970 = vmax.f32 %v878, 0.0
      %v971 = vmax.f32 %v881, 0.0
      %v972 = vmax.f32 %v886, 0.0
      %v973 = vmax.f32 %v889, 0.0
      %v974 = vmax.f32 %v894, 0.0
      %v975 = vmax.f32 %v897, 0.0
      %v976 = vmax.f32 %v902, 0.0
      %v977 = vmax.f32 %v905, 0.0
      %v978 = vmax.f32 %v910, 0.0
      %v979 = vmax.f32 %v913, 0.0
      %v980 = vpack.c.bf16 %v917, %v916
      %v981 = vpack.c.bf16 %v919, %v918
      %v982 = vpack.c.bf16 %v921, %v920
      %v983 = vpack.c.bf16 %v923, %v922
      %v984 = vpack.c.bf16 %v925, %v924
      %v985 = vpack.c.bf16 %v927, %v926
      %v986 = vpack.c.bf16 %v929, %v928
      %v987 = vpack.c.bf16 %v931, %v930
      %v988 = vpack.c.bf16 %v933, %v932
      %v989 = vpack.c.bf16 %v935, %v934
      %v990 = vpack.c.bf16 %v937, %v936
      %v991 = vpack.c.bf16 %v939, %v938
      %v992 = vpack.c.bf16 %v941, %v940
      %v993 = vpack.c.bf16 %v943, %v942
      %v994 = vpack.c.bf16 %v945, %v944
      %v995 = vpack.c.bf16 %v947, %v946
      %v996 = vpack.c.bf16 %v949, %v948
      %v997 = vpack.c.bf16 %v951, %v950
      %v998 = vpack.c.bf16 %v953, %v952
      %v999 = vpack.c.bf16 %v955, %v954
      %v1000 = vpack.c.bf16 %v957, %v956
      %v1001 = vpack.c.bf16 %v959, %v958
      %v1002 = vpack.c.bf16 %v961, %v960
      %v1003 = vpack.c.bf16 %v963, %v962
      %v1004 = vpack.c.bf16 %v965, %v964
      %v1005 = vpack.c.bf16 %v967, %v966
      %v1006 = vpack.c.bf16 %v969, %v968
      %v1007 = vpack.c.bf16 %v971, %v970
      %v1008 = vpack.c.bf16 %v973, %v972
      %v1009 = vpack.c.bf16 %v975, %v974
      %v1010 = vpack.c.bf16 %v977, %v976
      %v1011 = vpack.c.bf16 %v979, %v978
      %v1012 = vld [vmem:[%s3] sm:$0xf]
      %v1013 = vld [vmem:[%s3 + $0x4] sm:$0xf]
      %v1014 = vld [vmem:[%s4] sm:$0x1]
      %v1016 = vlaneseq
      %v1017 = vshrl.u32 %v1016, 7
      %v1018 = vsub.s32 0, %v1017
      %v1019 = vrot.slane %v1014, %v1018
      %v1023 = vunpack.c.l.b16 %v1012
      %v1024 = vunpack.c.l.b16 %v1013
      %v1025 = vpack.c.b16 %v1024, %v1023
      %vm1027 = vcmask 130048
      %v1029 = vsel %vm1027, %v980, 0
      %v1032 = vsel %vm1027, %v981, 0
      %v1035 = vsel %vm1027, %v982, 0
      %v1038 = vsel %vm1027, %v983, 0
      %v1041 = vsel %vm1027, %v984, 0
      %v1044 = vsel %vm1027, %v985, 0
      %v1047 = vsel %vm1027, %v986, 0
      %v1050 = vsel %vm1027, %v987, 0
      %v1053 = vsel %vm1027, %v988, 0
      %v1056 = vsel %vm1027, %v989, 0
      %v1059 = vsel %vm1027, %v990, 0
      %v1062 = vsel %vm1027, %v991, 0
      %v1065 = vsel %vm1027, %v992, 0
      %v1068 = vsel %vm1027, %v993, 0
      %v1071 = vsel %vm1027, %v994, 0
      %v1074 = vsel %vm1027, %v995, 0
      %v1077 = vsel %vm1027, %v996, 0
      %v1080 = vsel %vm1027, %v997, 0
      %v1083 = vsel %vm1027, %v998, 0
      %v1086 = vsel %vm1027, %v999, 0
      %v1089 = vsel %vm1027, %v1000, 0
      %v1092 = vsel %vm1027, %v1001, 0
      %v1095 = vsel %vm1027, %v1002, 0
      %v1098 = vsel %vm1027, %v1003, 0
      %v1101 = vsel %vm1027, %v1004, 0
      %v1104 = vsel %vm1027, %v1005, 0
      %v1107 = vsel %vm1027, %v1006, 0
      %v1110 = vsel %vm1027, %v1007, 0
      %v1113 = vsel %vm1027, %v1008, 0
      %v1116 = vsel %vm1027, %v1009, 0
      %v1119 = vsel %vm1027, %v1010, 0
      %v1122 = vsel %vm1027, %v1011, 0
      %1124 = vmatprep.subr.bf16.mxu0 0
      %1125 = vmatpush1.bf16.msra.mxu0 %v1025
      %1126 = vmatprep.subr.bf16.mxu0 0
      %1127 = vmatpush1.bf16.msra.mxu0 0
      %1128 = vmatprep.subr.bf16.mxu0 0
      %1129 = vmatpush1.bf16.msra.mxu0 0
      %1130 = vmatprep.subr.bf16.mxu0 0
      %1131 = vmatpush1.bf16.msra.mxu0 0
      %1132 = vmatprep.subr.bf16.mxu0 0
      %1133 = vmatpush1.bf16.msra.mxu0 0
      %1134 = vmatprep.subr.bf16.mxu0 0
      %1135 = vmatpush1.bf16.msra.mxu0 0
      %1136 = vmatprep.subr.bf16.mxu0 0
      %1137 = vmatpush1.bf16.msra.mxu0 0
      %1138 = vmatprep.subr.bf16.mxu0 0
      %1139 = vmatpush1.bf16.msra.mxu0 0
      %1140 = vmatprep.subr.bf16.mxu0 0
      %1141 = vmatpush1.bf16.msra.mxu0 0
      %1142 = vmatprep.subr.bf16.mxu0 0
      %1143 = vmatpush1.bf16.msra.mxu0 0
      %1144 = vmatprep.subr.bf16.mxu0 0
      %1145 = vmatpush1.bf16.msra.mxu0 0
      %1146 = vmatprep.subr.bf16.mxu0 0
      %1147 = vmatpush1.bf16.msra.mxu0 0
      %1148 = vmatprep.subr.bf16.mxu0 0
      %1149 = vmatpush1.bf16.msra.mxu0 0
      %1150 = vmatprep.subr.bf16.mxu0 0
      %1151 = vmatpush1.bf16.msra.mxu0 0
      %1152 = vmatprep.subr.bf16.mxu0 0
      %1153 = vmatpush1.bf16.msra.mxu0 0
      %1154 = vmatprep.subr.bf16.mxu0 0
      %1155 = vmatpush1.bf16.msra.mxu0 0
      %1156 = vmatprep.mubr.bf16.mxu0 0
      %1157 = vmatmul.mubr.bf16.gmra.mrb[0].mxu0 %v1029
      %v1158 = vpop.f32.mrb[0].mxu0
      %v1159 = vadd.f32 %v1019, %v1158
      %v1160 = vpop.f32.mrb[0].mxu0
      %v1161 = vpop.f32.mrb[0].mxu0
      %v1162 = vadd.f32 %v1019, %v1161
      %v1163 = vpop.f32.mrb[0].mxu0
      %1164 = vmatprep.mubr.bf16.mxu0 0
      %1165 = vmatmul.mubr.bf16.gmra.mrb[0].mxu0 %v1032
      %v1166 = vpop.f32.mrb[0].mxu0
      %v1167 = vadd.f32 %v1019, %v1166
      %v1168 = vpop.f32.mrb[0].mxu0
      %v1169 = vpop.f32.mrb[0].mxu0
      %v1170 = vadd.f32 %v1019, %v1169
      %v1171 = vpop.f32.mrb[0].mxu0
      %1172 = vmatprep.mubr.bf16.mxu0 0
      %1173 = vmatmul.mubr.bf16.gmra.mrb[0].mxu0 %v1035
      %v1174 = vpop.f32.mrb[0].mxu0
      %v1175 = vadd.f32 %v1019, %v1174
      %v1176 = vpop.f32.mrb[0].mxu0
      %v1177 = vpop.f32.mrb[0].mxu0
      %v1178 = vadd.f32 %v1019, %v1177
      %v1179 = vpop.f32.mrb[0].mxu0
      %1180 = vmatprep.mubr.bf16.mxu0 0
      %1181 = vmatmul.mubr.bf16.gmra.mrb[0].mxu0 %v1038
      %v1182 = vpop.f32.mrb[0].mxu0
      %v1183 = vadd.f32 %v1019, %v1182
      %v1184 = vpop.f32.mrb[0].mxu0
      %v1185 = vpop.f32.mrb[0].mxu0
      %v1186 = vadd.f32 %v1019, %v1185
      %v1187 = vpop.f32.mrb[0].mxu0
      %1188 = vmatprep.mubr.bf16.mxu0 0
      %1189 = vmatmul.mubr.bf16.gmra.mrb[0].mxu0 %v1041
      %v1190 = vpop.f32.mrb[0].mxu0
      %v1191 = vadd.f32 %v1019, %v1190
      %v1192 = vpop.f32.mrb[0].mxu0
      %v1193 = vpop.f32.mrb[0].mxu0
      %v1194 = vadd.f32 %v1019, %v1193
      %v1195 = vpop.f32.mrb[0].mxu0
      %1196 = vmatprep.mubr.bf16.mxu0 0
      %1197 = vmatmul.mubr.bf16.gmra.mrb[0].mxu0 %v1044
      %v1198 = vpop.f32.mrb[0].mxu0
      %v1199 = vadd.f32 %v1019, %v1198
      %v1200 = vpop.f32.mrb[0].mxu0
      %v1201 = vpop.f32.mrb[0].mxu0
      %v1202 = vadd.f32 %v1019, %v1201
      %v1203 = vpop.f32.mrb[0].mxu0
      %1204 = vmatprep.mubr.bf16.mxu0 0
      %1205 = vmatmul.mubr.bf16.gmra.mrb[0].mxu0 %v1047
      %v1206 = vpop.f32.mrb[0].mxu0
      %v1207 = vadd.f32 %v1019, %v1206
      %v1208 = vpop.f32.mrb[0].mxu0
      %v1209 = vpop.f32.mrb[0].mxu0
      %v1210 = vadd.f32 %v1019, %v1209
      %v1211 = vpop.f32.mrb[0].mxu0
      %1212 = vmatprep.mubr.bf16.mxu0 0
      %1213 = vmatmul.mubr.bf16.gmra.mrb[0].mxu0 %v1050
      %v1214 = vpop.f32.mrb[0].mxu0
      %v1215 = vadd.f32 %v1019, %v1214
      %v1216 = vpop.f32.mrb[0].mxu0
      %v1217 = vpop.f32.mrb[0].mxu0
      %v1218 = vadd.f32 %v1019, %v1217
      %v1219 = vpop.f32.mrb[0].mxu0
      %1220 = vmatprep.mubr.bf16.mxu0 0
      %1221 = vmatmul.mubr.bf16.gmra.mrb[0].mxu0 %v1053
      %v1222 = vpop.f32.mrb[0].mxu0
      %v1223 = vadd.f32 %v1019, %v1222
      %v1224 = vpop.f32.mrb[0].mxu0
      %v1225 = vpop.f32.mrb[0].mxu0
      %v1226 = vadd.f32 %v1019, %v1225
      %v1227 = vpop.f32.mrb[0].mxu0
      %1228 = vmatprep.mubr.bf16.mxu0 0
      %1229 = vmatmul.mubr.bf16.gmra.mrb[0].mxu0 %v1056
      %v1230 = vpop.f32.mrb[0].mxu0
      %v1231 = vadd.f32 %v1019, %v1230
      %v1232 = vpop.f32.mrb[0].mxu0
      %v1233 = vpop.f32.mrb[0].mxu0
      %v1234 = vadd.f32 %v1019, %v1233
      %v1235 = vpop.f32.mrb[0].mxu0
      %1236 = vmatprep.mubr.bf16.mxu0 0
      %1237 = vmatmul.mubr.bf16.gmra.mrb[0].mxu0 %v1059
      %v1238 = vpop.f32.mrb[0].mxu0
      %v1239 = vadd.f32 %v1019, %v1238
      %v1240 = vpop.f32.mrb[0].mxu0
      %v1241 = vpop.f32.mrb[0].mxu0
      %v1242 = vadd.f32 %v1019, %v1241
      %v1243 = vpop.f32.mrb[0].mxu0
      %1244 = vmatprep.mubr.bf16.mxu0 0
      %1245 = vmatmul.mubr.bf16.gmra.mrb[0].mxu0 %v1062
      %v1246 = vpop.f32.mrb[0].mxu0
      %v1247 = vadd.f32 %v1019, %v1246
      %v1248 = vpop.f32.mrb[0].mxu0
      %v1249 = vpop.f32.mrb[0].mxu0
      %v1250 = vadd.f32 %v1019, %v1249
      %v1251 = vpop.f32.mrb[0].mxu0
      %1252 = vmatprep.mubr.bf16.mxu0 0
      %1253 = vmatmul.mubr.bf16.gmra.mrb[0].mxu0 %v1065
      %v1254 = vpop.f32.mrb[0].mxu0
      %v1255 = vadd.f32 %v1019, %v1254
      %v1256 = vpop.f32.mrb[0].mxu0
      %v1257 = vpop.f32.mrb[0].mxu0
      %v1258 = vadd.f32 %v1019, %v1257
      %v1259 = vpop.f32.mrb[0].mxu0
      %1260 = vmatprep.mubr.bf16.mxu0 0
      %1261 = vmatmul.mubr.bf16.gmra.mrb[0].mxu0 %v1068
      %v1262 = vpop.f32.mrb[0].mxu0
      %v1263 = vadd.f32 %v1019, %v1262
      %v1264 = vpop.f32.mrb[0].mxu0
      %v1265 = vpop.f32.mrb[0].mxu0
      %v1266 = vadd.f32 %v1019, %v1265
      %v1267 = vpop.f32.mrb[0].mxu0
      %1268 = vmatprep.mubr.bf16.mxu0 0
      %1269 = vmatmul.mubr.bf16.gmra.mrb[0].mxu0 %v1071
      %v1270 = vpop.f32.mrb[0].mxu0
      %v1271 = vadd.f32 %v1019, %v1270
      %v1272 = vpop.f32.mrb[0].mxu0
      %v1273 = vpop.f32.mrb[0].mxu0
      %v1274 = vadd.f32 %v1019, %v1273
      %v1275 = vpop.f32.mrb[0].mxu0
      %1276 = vmatprep.mubr.bf16.mxu0 0
      %1277 = vmatmul.mubr.bf16.gmra.mrb[0].mxu0 %v1074
      %v1278 = vpop.f32.mrb[0].mxu0
      %v1279 = vadd.f32 %v1019, %v1278
      %v1280 = vpop.f32.mrb[0].mxu0
      %v1281 = vpop.f32.mrb[0].mxu0
      %v1282 = vadd.f32 %v1019, %v1281
      %v1283 = vpop.f32.mrb[0].mxu0
      %1284 = vmatprep.mubr.bf16.mxu0 0
      %1285 = vmatmul.mubr.bf16.gmra.mrb[0].mxu0 %v1077
      %v1286 = vpop.f32.mrb[0].mxu0
      %v1287 = vadd.f32 %v1019, %v1286
      %v1288 = vpop.f32.mrb[0].mxu0
      %v1289 = vpop.f32.mrb[0].mxu0
      %v1290 = vadd.f32 %v1019, %v1289
      %v1291 = vpop.f32.mrb[0].mxu0
      %1292 = vmatprep.mubr.bf16.mxu0 0
      %1293 = vmatmul.mubr.bf16.gmra.mrb[0].mxu0 %v1080
      %v1294 = vpop.f32.mrb[0].mxu0
      %v1295 = vadd.f32 %v1019, %v1294
      %v1296 = vpop.f32.mrb[0].mxu0
      %v1297 = vpop.f32.mrb[0].mxu0
      %v1298 = vadd.f32 %v1019, %v1297
      %v1299 = vpop.f32.mrb[0].mxu0
      %1300 = vmatprep.mubr.bf16.mxu0 0
      %1301 = vmatmul.mubr.bf16.gmra.mrb[0].mxu0 %v1083
      %v1302 = vpop.f32.mrb[0].mxu0
      %v1303 = vadd.f32 %v1019, %v1302
      %v1304 = vpop.f32.mrb[0].mxu0
      %v1305 = vpop.f32.mrb[0].mxu0
      %v1306 = vadd.f32 %v1019, %v1305
      %v1307 = vpop.f32.mrb[0].mxu0
      %1308 = vmatprep.mubr.bf16.mxu0 0
      %1309 = vmatmul.mubr.bf16.gmra.mrb[0].mxu0 %v1086
      %v1310 = vpop.f32.mrb[0].mxu0
      %v1311 = vadd.f32 %v1019, %v1310
      %v1312 = vpop.f32.mrb[0].mxu0
      %v1313 = vpop.f32.mrb[0].mxu0
      %v1314 = vadd.f32 %v1019, %v1313
      %v1315 = vpop.f32.mrb[0].mxu0
      %1316 = vmatprep.mubr.bf16.mxu0 0
      %1317 = vmatmul.mubr.bf16.gmra.mrb[0].mxu0 %v1089
      %v1318 = vpop.f32.mrb[0].mxu0
      %v1319 = vadd.f32 %v1019, %v1318
      %v1320 = vpop.f32.mrb[0].mxu0
      %v1321 = vpop.f32.mrb[0].mxu0
      %v1322 = vadd.f32 %v1019, %v1321
      %v1323 = vpop.f32.mrb[0].mxu0
      %1324 = vmatprep.mubr.bf16.mxu0 0
      %1325 = vmatmul.mubr.bf16.gmra.mrb[0].mxu0 %v1092
      %v1326 = vpop.f32.mrb[0].mxu0
      %v1327 = vadd.f32 %v1019, %v1326
      %v1328 = vpop.f32.mrb[0].mxu0
      %v1329 = vpop.f32.mrb[0].mxu0
      %v1330 = vadd.f32 %v1019, %v1329
      %v1331 = vpop.f32.mrb[0].mxu0
      %1332 = vmatprep.mubr.bf16.mxu0 0
      %1333 = vmatmul.mubr.bf16.gmra.mrb[0].mxu0 %v1095
      %v1334 = vpop.f32.mrb[0].mxu0
      %v1335 = vadd.f32 %v1019, %v1334
      %v1336 = vpop.f32.mrb[0].mxu0
      %v1337 = vpop.f32.mrb[0].mxu0
      %v1338 = vadd.f32 %v1019, %v1337
      %v1339 = vpop.f32.mrb[0].mxu0
      %1340 = vmatprep.mubr.bf16.mxu0 0
      %1341 = vmatmul.mubr.bf16.gmra.mrb[0].mxu0 %v1098
      %v1342 = vpop.f32.mrb[0].mxu0
      %v1343 = vadd.f32 %v1019, %v1342
      %v1344 = vpop.f32.mrb[0].mxu0
      %v1345 = vpop.f32.mrb[0].mxu0
      %v1346 = vadd.f32 %v1019, %v1345
      %v1347 = vpop.f32.mrb[0].mxu0
      %1348 = vmatprep.mubr.bf16.mxu0 0
      %1349 = vmatmul.mubr.bf16.gmra.mrb[0].mxu0 %v1101
      %v1350 = vpop.f32.mrb[0].mxu0
      %v1351 = vadd.f32 %v1019, %v1350
      %v1352 = vpop.f32.mrb[0].mxu0
      %v1353 = vpop.f32.mrb[0].mxu0
      %v1354 = vadd.f32 %v1019, %v1353
      %v1355 = vpop.f32.mrb[0].mxu0
      %1356 = vmatprep.mubr.bf16.mxu0 0
      %1357 = vmatmul.mubr.bf16.gmra.mrb[0].mxu0 %v1104
      %v1358 = vpop.f32.mrb[0].mxu0
      %v1359 = vadd.f32 %v1019, %v1358
      %v1360 = vpop.f32.mrb[0].mxu0
      %v1361 = vpop.f32.mrb[0].mxu0
      %v1362 = vadd.f32 %v1019, %v1361
      %v1363 = vpop.f32.mrb[0].mxu0
      %1364 = vmatprep.mubr.bf16.mxu0 0
      %1365 = vmatmul.mubr.bf16.gmra.mrb[0].mxu0 %v1107
      %v1366 = vpop.f32.mrb[0].mxu0
      %v1367 = vadd.f32 %v1019, %v1366
      %v1368 = vpop.f32.mrb[0].mxu0
      %v1369 = vpop.f32.mrb[0].mxu0
      %v1370 = vadd.f32 %v1019, %v1369
      %v1371 = vpop.f32.mrb[0].mxu0
      %1372 = vmatprep.mubr.bf16.mxu0 0
      %1373 = vmatmul.mubr.bf16.gmra.mrb[0].mxu0 %v1110
      %v1374 = vpop.f32.mrb[0].mxu0
      %v1375 = vadd.f32 %v1019, %v1374
      %v1376 = vpop.f32.mrb[0].mxu0
      %v1377 = vpop.f32.mrb[0].mxu0
      %v1378 = vadd.f32 %v1019, %v1377
      %v1379 = vpop.f32.mrb[0].mxu0
      %1380 = vmatprep.mubr.bf16.mxu0 0
      %1381 = vmatmul.mubr.bf16.gmra.mrb[0].mxu0 %v1113
      %v1382 = vpop.f32.mrb[0].mxu0
      %v1383 = vadd.f32 %v1019, %v1382
      %v1384 = vpop.f32.mrb[0].mxu0
      %v1385 = vpop.f32.mrb[0].mxu0
      %v1386 = vadd.f32 %v1019, %v1385
      %v1387 = vpop.f32.mrb[0].mxu0
      %1388 = vmatprep.mubr.bf16.mxu0 0
      %1389 = vmatmul.mubr.bf16.gmra.mrb[0].mxu0 %v1116
      %v1390 = vpop.f32.mrb[0].mxu0
      %v1391 = vadd.f32 %v1019, %v1390
      %v1392 = vpop.f32.mrb[0].mxu0
      %v1393 = vpop.f32.mrb[0].mxu0
      %v1394 = vadd.f32 %v1019, %v1393
      %v1395 = vpop.f32.mrb[0].mxu0
      %1396 = vmatprep.mubr.bf16.mxu0 0
      %1397 = vmatmul.mubr.bf16.gmra.mrb[0].mxu0 %v1119
      %v1398 = vpop.f32.mrb[0].mxu0
      %v1399 = vadd.f32 %v1019, %v1398
      %v1400 = vpop.f32.mrb[0].mxu0
      %v1401 = vpop.f32.mrb[0].mxu0
      %v1402 = vadd.f32 %v1019, %v1401
      %v1403 = vpop.f32.mrb[0].mxu0
      %1404 = vmatprep.mubr.bf16.mxu0 0
      %1405 = vmatmul.mubr.bf16.gmra.mrb[0].mxu0 %v1122
      %v1406 = vpop.f32.mrb[0].mxu0
      %v1407 = vadd.f32 %v1019, %v1406
      %v1408 = vpop.f32.mrb[0].mxu0
      %v1409 = vpop.f32.mrb[0].mxu0
      %v1410 = vadd.f32 %v1019, %v1409
      %v1411 = vpop.f32.mrb[0].mxu0
      %1412 = vdwg.mxu0
      %v1413 = vmax.f32 %v1159, 0.0
      %v1414 = vmax.f32 %v1162, 0.0
      %v1415 = vmax.f32 %v1167, 0.0
      %v1416 = vmax.f32 %v1170, 0.0
      %v1417 = vmax.f32 %v1175, 0.0
      %v1418 = vmax.f32 %v1178, 0.0
      %v1419 = vmax.f32 %v1183, 0.0
      %v1420 = vmax.f32 %v1186, 0.0
      %v1421 = vmax.f32 %v1191, 0.0
      %v1422 = vmax.f32 %v1194, 0.0
      %v1423 = vmax.f32 %v1199, 0.0
      %v1424 = vmax.f32 %v1202, 0.0
      %v1425 = vmax.f32 %v1207, 0.0
      %v1426 = vmax.f32 %v1210, 0.0
      %v1427 = vmax.f32 %v1215, 0.0
      %v1428 = vmax.f32 %v1218, 0.0
      %v1429 = vmax.f32 %v1223, 0.0
      %v1430 = vmax.f32 %v1226, 0.0
      %v1431 = vmax.f32 %v1231, 0.0
      %v1432 = vmax.f32 %v1234, 0.0
      %v1433 = vmax.f32 %v1239, 0.0
      %v1434 = vmax.f32 %v1242, 0.0
      %v1435 = vmax.f32 %v1247, 0.0
      %v1436 = vmax.f32 %v1250, 0.0
      %v1437 = vmax.f32 %v1255, 0.0
      %v1438 = vmax.f32 %v1258, 0.0
      %v1439 = vmax.f32 %v1263, 0.0
      %v1440 = vmax.f32 %v1266, 0.0
      %v1441 = vmax.f32 %v1271, 0.0
      %v1442 = vmax.f32 %v1274, 0.0
      %v1443 = vmax.f32 %v1279, 0.0
      %v1444 = vmax.f32 %v1282, 0.0
      %v1445 = vmax.f32 %v1287, 0.0
      %v1446 = vmax.f32 %v1290, 0.0
      %v1447 = vmax.f32 %v1295, 0.0
      %v1448 = vmax.f32 %v1298, 0.0
      %v1449 = vmax.f32 %v1303, 0.0
      %v1450 = vmax.f32 %v1306, 0.0
      %v1451 = vmax.f32 %v1311, 0.0
      %v1452 = vmax.f32 %v1314, 0.0
      %v1453 = vmax.f32 %v1319, 0.0
      %v1454 = vmax.f32 %v1322, 0.0
      %v1455 = vmax.f32 %v1327, 0.0
      %v1456 = vmax.f32 %v1330, 0.0
      %v1457 = vmax.f32 %v1335, 0.0
      %v1458 = vmax.f32 %v1338, 0.0
      %v1459 = vmax.f32 %v1343, 0.0
      %v1460 = vmax.f32 %v1346, 0.0
      %v1461 = vmax.f32 %v1351, 0.0
      %v1462 = vmax.f32 %v1354, 0.0
      %v1463 = vmax.f32 %v1359, 0.0
      %v1464 = vmax.f32 %v1362, 0.0
      %v1465 = vmax.f32 %v1367, 0.0
      %v1466 = vmax.f32 %v1370, 0.0
      %v1467 = vmax.f32 %v1375, 0.0
      %v1468 = vmax.f32 %v1378, 0.0
      %v1469 = vmax.f32 %v1383, 0.0
      %v1470 = vmax.f32 %v1386, 0.0
      %v1471 = vmax.f32 %v1391, 0.0
      %v1472 = vmax.f32 %v1394, 0.0
      %v1473 = vmax.f32 %v1399, 0.0
      %v1474 = vmax.f32 %v1402, 0.0
      %v1475 = vmax.f32 %v1407, 0.0
      %v1476 = vmax.f32 %v1410, 0.0
      %v1477 = vpack.c.bf16 %v1414, %v1413
      %v1478 = vpack.c.bf16 %v1416, %v1415
      %v1479 = vpack.c.bf16 %v1418, %v1417
      %v1480 = vpack.c.bf16 %v1420, %v1419
      %v1481 = vpack.c.bf16 %v1422, %v1421
      %v1482 = vpack.c.bf16 %v1424, %v1423
      %v1483 = vpack.c.bf16 %v1426, %v1425
      %v1484 = vpack.c.bf16 %v1428, %v1427
      %v1485 = vpack.c.bf16 %v1430, %v1429
      %v1486 = vpack.c.bf16 %v1432, %v1431
      %v1487 = vpack.c.bf16 %v1434, %v1433
      %v1488 = vpack.c.bf16 %v1436, %v1435
      %v1489 = vpack.c.bf16 %v1438, %v1437
      %v1490 = vpack.c.bf16 %v1440, %v1439
      %v1491 = vpack.c.bf16 %v1442, %v1441
      %v1492 = vpack.c.bf16 %v1444, %v1443
      %v1493 = vpack.c.bf16 %v1446, %v1445
      %v1494 = vpack.c.bf16 %v1448, %v1447
      %v1495 = vpack.c.bf16 %v1450, %v1449
      %v1496 = vpack.c.bf16 %v1452, %v1451
      %v1497 = vpack.c.bf16 %v1454, %v1453
      %v1498 = vpack.c.bf16 %v1456, %v1455
      %v1499 = vpack.c.bf16 %v1458, %v1457
      %v1500 = vpack.c.bf16 %v1460, %v1459
      %v1501 = vpack.c.bf16 %v1462, %v1461
      %v1502 = vpack.c.bf16 %v1464, %v1463
      %v1503 = vpack.c.bf16 %v1466, %v1465
      %v1504 = vpack.c.bf16 %v1468, %v1467
      %v1505 = vpack.c.bf16 %v1470, %v1469
      %v1506 = vpack.c.bf16 %v1472, %v1471
      %v1507 = vpack.c.bf16 %v1474, %v1473
      %v1508 = vpack.c.bf16 %v1476, %v1475
      %v1509 = vld [vmem:[%s5] sm:$0xf]
      %v1510 = vld [vmem:[%s6] sm:$0x1]
      %v1512 = vlaneseq
      %v1513 = vshrl.u32 %v1512, 7
      %v1514 = vsub.s32 0, %v1513
      %v1515 = vrot.slane %v1510, %v1514
      %vm1517 = vcmask 64512
      %v1519 = vsel %vm1517, %v1477, 0
      %v1522 = vsel %vm1517, %v1478, 0
      %v1525 = vsel %vm1517, %v1479, 0
      %v1528 = vsel %vm1517, %v1480, 0
      %v1531 = vsel %vm1517, %v1481, 0
      %v1534 = vsel %vm1517, %v1482, 0
      %v1537 = vsel %vm1517, %v1483, 0
      %v1540 = vsel %vm1517, %v1484, 0
      %v1543 = vsel %vm1517, %v1485, 0
      %v1546 = vsel %vm1517, %v1486, 0
      %v1549 = vsel %vm1517, %v1487, 0
      %v1552 = vsel %vm1517, %v1488, 0
      %v1555 = vsel %vm1517, %v1489, 0
      %v1558 = vsel %vm1517, %v1490, 0
      %v1561 = vsel %vm1517, %v1491, 0
      %v1564 = vsel %vm1517, %v1492, 0
      %v1567 = vsel %vm1517, %v1493, 0
      %v1570 = vsel %vm1517, %v1494, 0
      %v1573 = vsel %vm1517, %v1495, 0
      %v1576 = vsel %vm1517, %v1496, 0
      %v1579 = vsel %vm1517, %v1497, 0
      %v1582 = vsel %vm1517, %v1498, 0
      %v1585 = vsel %vm1517, %v1499, 0
      %v1588 = vsel %vm1517, %v1500, 0
      %v1591 = vsel %vm1517, %v1501, 0
      %v1594 = vsel %vm1517, %v1502, 0
      %v1597 = vsel %vm1517, %v1503, 0
      %v1600 = vsel %vm1517, %v1504, 0
      %v1603 = vsel %vm1517, %v1505, 0
      %v1606 = vsel %vm1517, %v1506, 0
      %v1609 = vsel %vm1517, %v1507, 0
      %v1612 = vsel %vm1517, %v1508, 0
      %vm1614 = vcmask 1043456
      %v1616 = vsel %vm1614, %v1509, 0
      %1618 = vmatprep.subr.bf16.mxu0 0
      %1619 = vmatpush1.bf16.msra.mxu0 %v1616
      %1620 = vmatprep.subr.bf16.mxu0 0
      %1621 = vmatpush1.bf16.msra.mxu0 0
      %1622 = vmatprep.subr.bf16.mxu0 0
      %1623 = vmatpush1.bf16.msra.mxu0 0
      %1624 = vmatprep.subr.bf16.mxu0 0
      %1625 = vmatpush1.bf16.msra.mxu0 0
      %1626 = vmatprep.subr.bf16.mxu0 0
      %1627 = vmatpush1.bf16.msra.mxu0 0
      %1628 = vmatprep.subr.bf16.mxu0 0
      %1629 = vmatpush1.bf16.msra.mxu0 0
      %1630 = vmatprep.subr.bf16.mxu0 0
      %1631 = vmatpush1.bf16.msra.mxu0 0
      %1632 = vmatprep.subr.bf16.mxu0 0
      %1633 = vmatpush1.bf16.msra.mxu0 0
      %1634 = vmatprep.subr.bf16.mxu0 0
      %1635 = vmatpush1.bf16.msra.mxu0 0
      %1636 = vmatprep.subr.bf16.mxu0 0
      %1637 = vmatpush1.bf16.msra.mxu0 0
      %1638 = vmatprep.subr.bf16.mxu0 0
      %1639 = vmatpush1.bf16.msra.mxu0 0
      %1640 = vmatprep.subr.bf16.mxu0 0
      %1641 = vmatpush1.bf16.msra.mxu0 0
      %1642 = vmatprep.subr.bf16.mxu0 0
      %1643 = vmatpush1.bf16.msra.mxu0 0
      %1644 = vmatprep.subr.bf16.mxu0 0
      %1645 = vmatpush1.bf16.msra.mxu0 0
      %1646 = vmatprep.subr.bf16.mxu0 0
      %1647 = vmatpush1.bf16.msra.mxu0 0
      %1648 = vmatprep.subr.bf16.mxu0 0
      %1649 = vmatpush1.bf16.msra.mxu0 0
      %1650 = vmatprep.mubr.bf16.mxu0 0
      %1651 = vmatmul.mubr.bf16.gmra.mrb[0].mxu0 %v1519
      %v1652 = vpop.f32.mrb[0].mxu0
      %v1653 = vadd.f32 %v1515, %v1652
      %v1654 = vpop.f32.mrb[0].mxu0
      %v1655 = vpop.f32.mrb[0].mxu0
      %v1656 = vadd.f32 %v1515, %v1655
      %v1657 = vpop.f32.mrb[0].mxu0
      %1658 = vmatprep.mubr.bf16.mxu0 0
      %1659 = vmatmul.mubr.bf16.gmra.mrb[0].mxu0 %v1522
      %v1660 = vpop.f32.mrb[0].mxu0
      %v1661 = vadd.f32 %v1515, %v1660
      %v1662 = vpop.f32.mrb[0].mxu0
      %v1663 = vpop.f32.mrb[0].mxu0
      %v1664 = vadd.f32 %v1515, %v1663
      %v1665 = vpop.f32.mrb[0].mxu0
      %1666 = vmatprep.mubr.bf16.mxu0 0
      %1667 = vmatmul.mubr.bf16.gmra.mrb[0].mxu0 %v1525
      %v1668 = vpop.f32.mrb[0].mxu0
      %v1669 = vadd.f32 %v1515, %v1668
      %v1670 = vpop.f32.mrb[0].mxu0
      %v1671 = vpop.f32.mrb[0].mxu0
      %v1672 = vadd.f32 %v1515, %v1671
      %v1673 = vpop.f32.mrb[0].mxu0
      %1674 = vmatprep.mubr.bf16.mxu0 0
      %1675 = vmatmul.mubr.bf16.gmra.mrb[0].mxu0 %v1528
      %v1676 = vpop.f32.mrb[0].mxu0
      %v1677 = vadd.f32 %v1515, %v1676
      %v1678 = vpop.f32.mrb[0].mxu0
      %v1679 = vpop.f32.mrb[0].mxu0
      %v1680 = vadd.f32 %v1515, %v1679
      %v1681 = vpop.f32.mrb[0].mxu0
      %1682 = vmatprep.mubr.bf16.mxu0 0
      %1683 = vmatmul.mubr.bf16.gmra.mrb[0].mxu0 %v1531
      %v1684 = vpop.f32.mrb[0].mxu0
      %v1685 = vadd.f32 %v1515, %v1684
      %v1686 = vpop.f32.mrb[0].mxu0
      %v1687 = vpop.f32.mrb[0].mxu0
      %v1688 = vadd.f32 %v1515, %v1687
      %v1689 = vpop.f32.mrb[0].mxu0
      %1690 = vmatprep.mubr.bf16.mxu0 0
      %1691 = vmatmul.mubr.bf16.gmra.mrb[0].mxu0 %v1534
      %v1692 = vpop.f32.mrb[0].mxu0
      %v1693 = vadd.f32 %v1515, %v1692
      %v1694 = vpop.f32.mrb[0].mxu0
      %v1695 = vpop.f32.mrb[0].mxu0
      %v1696 = vadd.f32 %v1515, %v1695
      %v1697 = vpop.f32.mrb[0].mxu0
      %1698 = vmatprep.mubr.bf16.mxu0 0
      %1699 = vmatmul.mubr.bf16.gmra.mrb[0].mxu0 %v1537
      %v1700 = vpop.f32.mrb[0].mxu0
      %v1701 = vadd.f32 %v1515, %v1700
      %v1702 = vpop.f32.mrb[0].mxu0
      %v1703 = vpop.f32.mrb[0].mxu0
      %v1704 = vadd.f32 %v1515, %v1703
      %v1705 = vpop.f32.mrb[0].mxu0
      %1706 = vmatprep.mubr.bf16.mxu0 0
      %1707 = vmatmul.mubr.bf16.gmra.mrb[0].mxu0 %v1540
      %v1708 = vpop.f32.mrb[0].mxu0
      %v1709 = vadd.f32 %v1515, %v1708
      %v1710 = vpop.f32.mrb[0].mxu0
      %v1711 = vpop.f32.mrb[0].mxu0
      %v1712 = vadd.f32 %v1515, %v1711
      %v1713 = vpop.f32.mrb[0].mxu0
      %1714 = vmatprep.mubr.bf16.mxu0 0
      %1715 = vmatmul.mubr.bf16.gmra.mrb[0].mxu0 %v1543
      %v1716 = vpop.f32.mrb[0].mxu0
      %v1717 = vadd.f32 %v1515, %v1716
      %v1718 = vpop.f32.mrb[0].mxu0
      %v1719 = vpop.f32.mrb[0].mxu0
      %v1720 = vadd.f32 %v1515, %v1719
      %v1721 = vpop.f32.mrb[0].mxu0
      %1722 = vmatprep.mubr.bf16.mxu0 0
      %1723 = vmatmul.mubr.bf16.gmra.mrb[0].mxu0 %v1546
      %v1724 = vpop.f32.mrb[0].mxu0
      %v1725 = vadd.f32 %v1515, %v1724
      %v1726 = vpop.f32.mrb[0].mxu0
      %v1727 = vpop.f32.mrb[0].mxu0
      %v1728 = vadd.f32 %v1515, %v1727
      %v1729 = vpop.f32.mrb[0].mxu0
      %1730 = vmatprep.mubr.bf16.mxu0 0
      %1731 = vmatmul.mubr.bf16.gmra.mrb[0].mxu0 %v1549
      %v1732 = vpop.f32.mrb[0].mxu0
      %v1733 = vadd.f32 %v1515, %v1732
      %v1734 = vpop.f32.mrb[0].mxu0
      %v1735 = vpop.f32.mrb[0].mxu0
      %v1736 = vadd.f32 %v1515, %v1735
      %v1737 = vpop.f32.mrb[0].mxu0
      %1738 = vmatprep.mubr.bf16.mxu0 0
      %1739 = vmatmul.mubr.bf16.gmra.mrb[0].mxu0 %v1552
      %v1740 = vpop.f32.mrb[0].mxu0
      %v1741 = vadd.f32 %v1515, %v1740
      %v1742 = vpop.f32.mrb[0].mxu0
      %v1743 = vpop.f32.mrb[0].mxu0
      %v1744 = vadd.f32 %v1515, %v1743
      %v1745 = vpop.f32.mrb[0].mxu0
      %1746 = vmatprep.mubr.bf16.mxu0 0
      %1747 = vmatmul.mubr.bf16.gmra.mrb[0].mxu0 %v1555
      %v1748 = vpop.f32.mrb[0].mxu0
      %v1749 = vadd.f32 %v1515, %v1748
      %v1750 = vpop.f32.mrb[0].mxu0
      %v1751 = vpop.f32.mrb[0].mxu0
      %v1752 = vadd.f32 %v1515, %v1751
      %v1753 = vpop.f32.mrb[0].mxu0
      %1754 = vmatprep.mubr.bf16.mxu0 0
      %1755 = vmatmul.mubr.bf16.gmra.mrb[0].mxu0 %v1558
      %v1756 = vpop.f32.mrb[0].mxu0
      %v1757 = vadd.f32 %v1515, %v1756
      %v1758 = vpop.f32.mrb[0].mxu0
      %v1759 = vpop.f32.mrb[0].mxu0
      %v1760 = vadd.f32 %v1515, %v1759
      %v1761 = vpop.f32.mrb[0].mxu0
      %1762 = vmatprep.mubr.bf16.mxu0 0
      %1763 = vmatmul.mubr.bf16.gmra.mrb[0].mxu0 %v1561
      %v1764 = vpop.f32.mrb[0].mxu0
      %v1765 = vadd.f32 %v1515, %v1764
      %v1766 = vpop.f32.mrb[0].mxu0
      %v1767 = vpop.f32.mrb[0].mxu0
      %v1768 = vadd.f32 %v1515, %v1767
      %v1769 = vpop.f32.mrb[0].mxu0
      %1770 = vmatprep.mubr.bf16.mxu0 0
      %1771 = vmatmul.mubr.bf16.gmra.mrb[0].mxu0 %v1564
      %v1772 = vpop.f32.mrb[0].mxu0
      %v1773 = vadd.f32 %v1515, %v1772
      %v1774 = vpop.f32.mrb[0].mxu0
      %v1775 = vpop.f32.mrb[0].mxu0
      %v1776 = vadd.f32 %v1515, %v1775
      %v1777 = vpop.f32.mrb[0].mxu0
      %1778 = vmatprep.mubr.bf16.mxu0 0
      %1779 = vmatmul.mubr.bf16.gmra.mrb[0].mxu0 %v1567
      %v1780 = vpop.f32.mrb[0].mxu0
      %v1781 = vadd.f32 %v1515, %v1780
      %v1782 = vpop.f32.mrb[0].mxu0
      %v1783 = vpop.f32.mrb[0].mxu0
      %v1784 = vadd.f32 %v1515, %v1783
      %v1785 = vpop.f32.mrb[0].mxu0
      %1786 = vmatprep.mubr.bf16.mxu0 0
      %1787 = vmatmul.mubr.bf16.gmra.mrb[0].mxu0 %v1570
      %v1788 = vpop.f32.mrb[0].mxu0
      %v1789 = vadd.f32 %v1515, %v1788
      %v1790 = vpop.f32.mrb[0].mxu0
      %v1791 = vpop.f32.mrb[0].mxu0
      %v1792 = vadd.f32 %v1515, %v1791
      %v1793 = vpop.f32.mrb[0].mxu0
      %1794 = vmatprep.mubr.bf16.mxu0 0
      %1795 = vmatmul.mubr.bf16.gmra.mrb[0].mxu0 %v1573
      %v1796 = vpop.f32.mrb[0].mxu0
      %v1797 = vadd.f32 %v1515, %v1796
      %v1798 = vpop.f32.mrb[0].mxu0
      %v1799 = vpop.f32.mrb[0].mxu0
      %v1800 = vadd.f32 %v1515, %v1799
      %v1801 = vpop.f32.mrb[0].mxu0
      %1802 = vmatprep.mubr.bf16.mxu0 0
      %1803 = vmatmul.mubr.bf16.gmra.mrb[0].mxu0 %v1576
      %v1804 = vpop.f32.mrb[0].mxu0
      %v1805 = vadd.f32 %v1515, %v1804
      %v1806 = vpop.f32.mrb[0].mxu0
      %v1807 = vpop.f32.mrb[0].mxu0
      %v1808 = vadd.f32 %v1515, %v1807
      %v1809 = vpop.f32.mrb[0].mxu0
      %1810 = vmatprep.mubr.bf16.mxu0 0
      %1811 = vmatmul.mubr.bf16.gmra.mrb[0].mxu0 %v1579
      %v1812 = vpop.f32.mrb[0].mxu0
      %v1813 = vadd.f32 %v1515, %v1812
      %v1814 = vpop.f32.mrb[0].mxu0
      %v1815 = vpop.f32.mrb[0].mxu0
      %v1816 = vadd.f32 %v1515, %v1815
      %v1817 = vpop.f32.mrb[0].mxu0
      %1818 = vmatprep.mubr.bf16.mxu0 0
      %1819 = vmatmul.mubr.bf16.gmra.mrb[0].mxu0 %v1582
      %v1820 = vpop.f32.mrb[0].mxu0
      %v1821 = vadd.f32 %v1515, %v1820
      %v1822 = vpop.f32.mrb[0].mxu0
      %v1823 = vpop.f32.mrb[0].mxu0
      %v1824 = vadd.f32 %v1515, %v1823
      %v1825 = vpop.f32.mrb[0].mxu0
      %1826 = vmatprep.mubr.bf16.mxu0 0
      %1827 = vmatmul.mubr.bf16.gmra.mrb[0].mxu0 %v1585
      %v1828 = vpop.f32.mrb[0].mxu0
      %v1829 = vadd.f32 %v1515, %v1828
      %v1830 = vpop.f32.mrb[0].mxu0
      %v1831 = vpop.f32.mrb[0].mxu0
      %v1832 = vadd.f32 %v1515, %v1831
      %v1833 = vpop.f32.mrb[0].mxu0
      %1834 = vmatprep.mubr.bf16.mxu0 0
      %1835 = vmatmul.mubr.bf16.gmra.mrb[0].mxu0 %v1588
      %v1836 = vpop.f32.mrb[0].mxu0
      %v1837 = vadd.f32 %v1515, %v1836
      %v1838 = vpop.f32.mrb[0].mxu0
      %v1839 = vpop.f32.mrb[0].mxu0
      %v1840 = vadd.f32 %v1515, %v1839
      %v1841 = vpop.f32.mrb[0].mxu0
      %1842 = vmatprep.mubr.bf16.mxu0 0
      %1843 = vmatmul.mubr.bf16.gmra.mrb[0].mxu0 %v1591
      %v1844 = vpop.f32.mrb[0].mxu0
      %v1845 = vadd.f32 %v1515, %v1844
      %v1846 = vpop.f32.mrb[0].mxu0
      %v1847 = vpop.f32.mrb[0].mxu0
      %v1848 = vadd.f32 %v1515, %v1847
      %v1849 = vpop.f32.mrb[0].mxu0
      %1850 = vmatprep.mubr.bf16.mxu0 0
      %1851 = vmatmul.mubr.bf16.gmra.mrb[0].mxu0 %v1594
      %v1852 = vpop.f32.mrb[0].mxu0
      %v1853 = vadd.f32 %v1515, %v1852
      %v1854 = vpop.f32.mrb[0].mxu0
      %v1855 = vpop.f32.mrb[0].mxu0
      %v1856 = vadd.f32 %v1515, %v1855
      %v1857 = vpop.f32.mrb[0].mxu0
      %1858 = vmatprep.mubr.bf16.mxu0 0
      %1859 = vmatmul.mubr.bf16.gmra.mrb[0].mxu0 %v1597
      %v1860 = vpop.f32.mrb[0].mxu0
      %v1861 = vadd.f32 %v1515, %v1860
      %v1862 = vpop.f32.mrb[0].mxu0
      %v1863 = vpop.f32.mrb[0].mxu0
      %v1864 = vadd.f32 %v1515, %v1863
      %v1865 = vpop.f32.mrb[0].mxu0
      %1866 = vmatprep.mubr.bf16.mxu0 0
      %1867 = vmatmul.mubr.bf16.gmra.mrb[0].mxu0 %v1600
      %v1868 = vpop.f32.mrb[0].mxu0
      %v1869 = vadd.f32 %v1515, %v1868
      %v1870 = vpop.f32.mrb[0].mxu0
      %v1871 = vpop.f32.mrb[0].mxu0
      %v1872 = vadd.f32 %v1515, %v1871
      %v1873 = vpop.f32.mrb[0].mxu0
      %1874 = vmatprep.mubr.bf16.mxu0 0
      %1875 = vmatmul.mubr.bf16.gmra.mrb[0].mxu0 %v1603
      %v1876 = vpop.f32.mrb[0].mxu0
      %v1877 = vadd.f32 %v1515, %v1876
      %v1878 = vpop.f32.mrb[0].mxu0
      %v1879 = vpop.f32.mrb[0].mxu0
      %v1880 = vadd.f32 %v1515, %v1879
      %v1881 = vpop.f32.mrb[0].mxu0
      %1882 = vmatprep.mubr.bf16.mxu0 0
      %1883 = vmatmul.mubr.bf16.gmra.mrb[0].mxu0 %v1606
      %v1884 = vpop.f32.mrb[0].mxu0
      %v1885 = vadd.f32 %v1515, %v1884
      %v1886 = vpop.f32.mrb[0].mxu0
      %v1887 = vpop.f32.mrb[0].mxu0
      %v1888 = vadd.f32 %v1515, %v1887
      %v1889 = vpop.f32.mrb[0].mxu0
      %1890 = vmatprep.mubr.bf16.mxu0 0
      %1891 = vmatmul.mubr.bf16.gmra.mrb[0].mxu0 %v1609
      %v1892 = vpop.f32.mrb[0].mxu0
      %v1893 = vadd.f32 %v1515, %v1892
      %v1894 = vpop.f32.mrb[0].mxu0
      %v1895 = vpop.f32.mrb[0].mxu0
      %v1896 = vadd.f32 %v1515, %v1895
      %v1897 = vpop.f32.mrb[0].mxu0
      %1898 = vmatprep.mubr.bf16.mxu0 0
      %1899 = vmatmul.mubr.bf16.gmra.mrb[0].mxu0 %v1612
      %v1900 = vpop.f32.mrb[0].mxu0
      %v1901 = vadd.f32 %v1515, %v1900
      %v1902 = vpop.f32.mrb[0].mxu0
      %v1903 = vpop.f32.mrb[0].mxu0
      %v1904 = vadd.f32 %v1515, %v1903
      %v1905 = vpop.f32.mrb[0].mxu0
      %1906 = vdwg.mxu0
      %1907 = vmax.xlane.f32.xlu0 %v1653
      %v1908 = vpop.xlane.xlu0 %1907
      %1909 = vmax.xlane.f32.xlu0 %v1656
      %v1910 = vpop.xlane.xlu0 %1909
      %1911 = vmax.xlane.f32.xlu0 %v1661
      %v1912 = vpop.xlane.xlu0 %1911
      %1913 = vmax.xlane.f32.xlu0 %v1664
      %v1914 = vpop.xlane.xlu0 %1913
      %1915 = vmax.xlane.f32.xlu0 %v1669
      %v1916 = vpop.xlane.xlu0 %1915
      %1917 = vmax.xlane.f32.xlu0 %v1672
      %v1918 = vpop.xlane.xlu0 %1917
      %1919 = vmax.xlane.f32.xlu0 %v1677
      %v1920 = vpop.xlane.xlu0 %1919
      %1921 = vmax.xlane.f32.xlu0 %v1680
      %v1922 = vpop.xlane.xlu0 %1921
      %1923 = vmax.xlane.f32.xlu0 %v1685
      %v1924 = vpop.xlane.xlu0 %1923
      %1925 = vmax.xlane.f32.xlu0 %v1688
      %v1926 = vpop.xlane.xlu0 %1925
      %1927 = vmax.xlane.f32.xlu0 %v1693
      %v1928 = vpop.xlane.xlu0 %1927
      %1929 = vmax.xlane.f32.xlu0 %v1696
      %v1930 = vpop.xlane.xlu0 %1929
      %1931 = vmax.xlane.f32.xlu0 %v1701
      %v1932 = vpop.xlane.xlu0 %1931
      %1933 = vmax.xlane.f32.xlu0 %v1704
      %v1934 = vpop.xlane.xlu0 %1933
      %1935 = vmax.xlane.f32.xlu0 %v1709
      %v1936 = vpop.xlane.xlu0 %1935
      %1937 = vmax.xlane.f32.xlu0 %v1712
      %v1938 = vpop.xlane.xlu0 %1937
      %1939 = vmax.xlane.f32.xlu0 %v1717
      %v1940 = vpop.xlane.xlu0 %1939
      %1941 = vmax.xlane.f32.xlu0 %v1720
      %v1942 = vpop.xlane.xlu0 %1941
      %1943 = vmax.xlane.f32.xlu0 %v1725
      %v1944 = vpop.xlane.xlu0 %1943
      %1945 = vmax.xlane.f32.xlu0 %v1728
      %v1946 = vpop.xlane.xlu0 %1945
      %1947 = vmax.xlane.f32.xlu0 %v1733
      %v1948 = vpop.xlane.xlu0 %1947
      %1949 = vmax.xlane.f32.xlu0 %v1736
      %v1950 = vpop.xlane.xlu0 %1949
      %1951 = vmax.xlane.f32.xlu0 %v1741
      %v1952 = vpop.xlane.xlu0 %1951
      %1953 = vmax.xlane.f32.xlu0 %v1744
      %v1954 = vpop.xlane.xlu0 %1953
      %1955 = vmax.xlane.f32.xlu0 %v1749
      %v1956 = vpop.xlane.xlu0 %1955
      %1957 = vmax.xlane.f32.xlu0 %v1752
      %v1958 = vpop.xlane.xlu0 %1957
      %1959 = vmax.xlane.f32.xlu0 %v1757
      %v1960 = vpop.xlane.xlu0 %1959
      %1961 = vmax.xlane.f32.xlu0 %v1760
      %v1962 = vpop.xlane.xlu0 %1961
      %1963 = vmax.xlane.f32.xlu0 %v1765
      %v1964 = vpop.xlane.xlu0 %1963
      %1965 = vmax.xlane.f32.xlu0 %v1768
      %v1966 = vpop.xlane.xlu0 %1965
      %1967 = vmax.xlane.f32.xlu0 %v1773
      %v1968 = vpop.xlane.xlu0 %1967
      %1969 = vmax.xlane.f32.xlu0 %v1776
      %v1970 = vpop.xlane.xlu0 %1969
      %1971 = vmax.xlane.f32.xlu0 %v1781
      %v1972 = vpop.xlane.xlu0 %1971
      %1973 = vmax.xlane.f32.xlu0 %v1784
      %v1974 = vpop.xlane.xlu0 %1973
      %1975 = vmax.xlane.f32.xlu0 %v1789
      %v1976 = vpop.xlane.xlu0 %1975
      %1977 = vmax.xlane.f32.xlu0 %v1792
      %v1978 = vpop.xlane.xlu0 %1977
      %1979 = vmax.xlane.f32.xlu0 %v1797
      %v1980 = vpop.xlane.xlu0 %1979
      %1981 = vmax.xlane.f32.xlu0 %v1800
      %v1982 = vpop.xlane.xlu0 %1981
      %1983 = vmax.xlane.f32.xlu0 %v1805
      %v1984 = vpop.xlane.xlu0 %1983
      %1985 = vmax.xlane.f32.xlu0 %v1808
      %v1986 = vpop.xlane.xlu0 %1985
      %1987 = vmax.xlane.f32.xlu0 %v1813
      %v1988 = vpop.xlane.xlu0 %1987
      %1989 = vmax.xlane.f32.xlu0 %v1816
      %v1990 = vpop.xlane.xlu0 %1989
      %1991 = vmax.xlane.f32.xlu0 %v1821
      %v1992 = vpop.xlane.xlu0 %1991
      %1993 = vmax.xlane.f32.xlu0 %v1824
      %v1994 = vpop.xlane.xlu0 %1993
      %1995 = vmax.xlane.f32.xlu0 %v1829
      %v1996 = vpop.xlane.xlu0 %1995
      %1997 = vmax.xlane.f32.xlu0 %v1832
      %v1998 = vpop.xlane.xlu0 %1997
      %1999 = vmax.xlane.f32.xlu0 %v1837
      %v2000 = vpop.xlane.xlu0 %1999
      %2001 = vmax.xlane.f32.xlu0 %v1840
      %v2002 = vpop.xlane.xlu0 %2001
      %2003 = vmax.xlane.f32.xlu0 %v1845
      %v2004 = vpop.xlane.xlu0 %2003
      %2005 = vmax.xlane.f32.xlu0 %v1848
      %v2006 = vpop.xlane.xlu0 %2005
      %2007 = vmax.xlane.f32.xlu0 %v1853
      %v2008 = vpop.xlane.xlu0 %2007
      %2009 = vmax.xlane.f32.xlu0 %v1856
      %v2010 = vpop.xlane.xlu0 %2009
      %2011 = vmax.xlane.f32.xlu0 %v1861
      %v2012 = vpop.xlane.xlu0 %2011
      %2013 = vmax.xlane.f32.xlu0 %v1864
      %v2014 = vpop.xlane.xlu0 %2013
      %2015 = vmax.xlane.f32.xlu0 %v1869
      %v2016 = vpop.xlane.xlu0 %2015
      %2017 = vmax.xlane.f32.xlu0 %v1872
      %v2018 = vpop.xlane.xlu0 %2017
      %2019 = vmax.xlane.f32.xlu0 %v1877
      %v2020 = vpop.xlane.xlu0 %2019
      %2021 = vmax.xlane.f32.xlu0 %v1880
      %v2022 = vpop.xlane.xlu0 %2021
      %2023 = vmax.xlane.f32.xlu0 %v1885
      %v2024 = vpop.xlane.xlu0 %2023
      %2025 = vmax.xlane.f32.xlu0 %v1888
      %v2026 = vpop.xlane.xlu0 %2025
      %2027 = vmax.xlane.f32.xlu0 %v1893
      %v2028 = vpop.xlane.xlu0 %2027
      %2029 = vmax.xlane.f32.xlu0 %v1896
      %v2030 = vpop.xlane.xlu0 %2029
      %2031 = vmax.xlane.f32.xlu0 %v1901
      %v2032 = vpop.xlane.xlu0 %2031
      %2033 = vmax.xlane.f32.xlu0 %v1904
      %v2034 = vpop.xlane.xlu0 %2033
      %v2035 = vsub.f32 %v1653, %v1908
      %v2036 = vsub.f32 %v1656, %v1910
      %v2037 = vsub.f32 %v1661, %v1912
      %v2038 = vsub.f32 %v1664, %v1914
      %v2039 = vsub.f32 %v1669, %v1916
      %v2040 = vsub.f32 %v1672, %v1918
      %v2041 = vsub.f32 %v1677, %v1920
      %v2042 = vsub.f32 %v1680, %v1922
      %v2043 = vsub.f32 %v1685, %v1924
      %v2044 = vsub.f32 %v1688, %v1926
      %v2045 = vsub.f32 %v1693, %v1928
      %v2046 = vsub.f32 %v1696, %v1930
      %v2047 = vsub.f32 %v1701, %v1932
      %v2048 = vsub.f32 %v1704, %v1934
      %v2049 = vsub.f32 %v1709, %v1936
      %v2050 = vsub.f32 %v1712, %v1938
      %v2051 = vsub.f32 %v1717, %v1940
      %v2052 = vsub.f32 %v1720, %v1942
      %v2053 = vsub.f32 %v1725, %v1944
      %v2054 = vsub.f32 %v1728, %v1946
      %v2055 = vsub.f32 %v1733, %v1948
      %v2056 = vsub.f32 %v1736, %v1950
      %v2057 = vsub.f32 %v1741, %v1952
      %v2058 = vsub.f32 %v1744, %v1954
      %v2059 = vsub.f32 %v1749, %v1956
      %v2060 = vsub.f32 %v1752, %v1958
      %v2061 = vsub.f32 %v1757, %v1960
      %v2062 = vsub.f32 %v1760, %v1962
      %v2063 = vsub.f32 %v1765, %v1964
      %v2064 = vsub.f32 %v1768, %v1966
      %v2065 = vsub.f32 %v1773, %v1968
      %v2066 = vsub.f32 %v1776, %v1970
      %v2067 = vsub.f32 %v1781, %v1972
      %v2068 = vsub.f32 %v1784, %v1974
      %v2069 = vsub.f32 %v1789, %v1976
      %v2070 = vsub.f32 %v1792, %v1978
      %v2071 = vsub.f32 %v1797, %v1980
      %v2072 = vsub.f32 %v1800, %v1982
      %v2073 = vsub.f32 %v1805, %v1984
      %v2074 = vsub.f32 %v1808, %v1986
      %v2075 = vsub.f32 %v1813, %v1988
      %v2076 = vsub.f32 %v1816, %v1990
      %v2077 = vsub.f32 %v1821, %v1992
      %v2078 = vsub.f32 %v1824, %v1994
      %v2079 = vsub.f32 %v1829, %v1996
      %v2080 = vsub.f32 %v1832, %v1998
      %v2081 = vsub.f32 %v1837, %v2000
      %v2082 = vsub.f32 %v1840, %v2002
      %v2083 = vsub.f32 %v1845, %v2004
      %v2084 = vsub.f32 %v1848, %v2006
      %v2085 = vsub.f32 %v1853, %v2008
      %v2086 = vsub.f32 %v1856, %v2010
      %v2087 = vsub.f32 %v1861, %v2012
      %v2088 = vsub.f32 %v1864, %v2014
      %v2089 = vsub.f32 %v1869, %v2016
      %v2090 = vsub.f32 %v1872, %v2018
      %v2091 = vsub.f32 %v1877, %v2020
      %v2092 = vsub.f32 %v1880, %v2022
      %v2093 = vsub.f32 %v1885, %v2024
      %v2094 = vsub.f32 %v1888, %v2026
      %v2095 = vsub.f32 %v1893, %v2028
      %v2096 = vsub.f32 %v1896, %v2030
      %v2097 = vsub.f32 %v1901, %v2032
      %v2098 = vsub.f32 %v1904, %v2034
      %v2099 = vmul.f32 %v2035, 1.442695
      %v2100 = vpow.pop %v2099
      %v2101 = vmul.f32 %v2036, 1.442695
      %v2102 = vpow.pop %v2101
      %v2103 = vmul.f32 %v2037, 1.442695
      %v2104 = vpow.pop %v2103
      %v2105 = vmul.f32 %v2038, 1.442695
      %v2106 = vpow.pop %v2105
      %v2107 = vmul.f32 %v2039, 1.442695
      %v2108 = vpow.pop %v2107
      %v2109 = vmul.f32 %v2040, 1.442695
      %v2110 = vpow.pop %v2109
      %v2111 = vmul.f32 %v2041, 1.442695
      %v2112 = vpow.pop %v2111
      %v2113 = vmul.f32 %v2042, 1.442695
      %v2114 = vpow.pop %v2113
      %v2115 = vmul.f32 %v2043, 1.442695
      %v2116 = vpow.pop %v2115
      %v2117 = vmul.f32 %v2044, 1.442695
      %v2118 = vpow.pop %v2117
      %v2119 = vmul.f32 %v2045, 1.442695
      %v2120 = vpow.pop %v2119
      %v2121 = vmul.f32 %v2046, 1.442695
      %v2122 = vpow.pop %v2121
      %v2123 = vmul.f32 %v2047, 1.442695
      %v2124 = vpow.pop %v2123
      %v2125 = vmul.f32 %v2048, 1.442695
      %v2126 = vpow.pop %v2125
      %v2127 = vmul.f32 %v2049, 1.442695
      %v2128 = vpow.pop %v2127
      %v2129 = vmul.f32 %v2050, 1.442695
      %v2130 = vpow.pop %v2129
      %v2131 = vmul.f32 %v2051, 1.442695
      %v2132 = vpow.pop %v2131
      %v2133 = vmul.f32 %v2052, 1.442695
      %v2134 = vpow.pop %v2133
      %v2135 = vmul.f32 %v2053, 1.442695
      %v2136 = vpow.pop %v2135
      %v2137 = vmul.f32 %v2054, 1.442695
      %v2138 = vpow.pop %v2137
      %v2139 = vmul.f32 %v2055, 1.442695
      %v2140 = vpow.pop %v2139
      %v2141 = vmul.f32 %v2056, 1.442695
      %v2142 = vpow.pop %v2141
      %v2143 = vmul.f32 %v2057, 1.442695
      %v2144 = vpow.pop %v2143
      %v2145 = vmul.f32 %v2058, 1.442695
      %v2146 = vpow.pop %v2145
      %v2147 = vmul.f32 %v2059, 1.442695
      %v2148 = vpow.pop %v2147
      %v2149 = vmul.f32 %v2060, 1.442695
      %v2150 = vpow.pop %v2149
      %v2151 = vmul.f32 %v2061, 1.442695
      %v2152 = vpow.pop %v2151
      %v2153 = vmul.f32 %v2062, 1.442695
      %v2154 = vpow.pop %v2153
      %v2155 = vmul.f32 %v2063, 1.442695
      %v2156 = vpow.pop %v2155
      %v2157 = vmul.f32 %v2064, 1.442695
      %v2158 = vpow.pop %v2157
      %v2159 = vmul.f32 %v2065, 1.442695
      %v2160 = vpow.pop %v2159
      %v2161 = vmul.f32 %v2066, 1.442695
      %v2162 = vpow.pop %v2161
      %v2163 = vmul.f32 %v2067, 1.442695
      %v2164 = vpow.pop %v2163
      %v2165 = vmul.f32 %v2068, 1.442695
      %v2166 = vpow.pop %v2165
      %v2167 = vmul.f32 %v2069, 1.442695
      %v2168 = vpow.pop %v2167
      %v2169 = vmul.f32 %v2070, 1.442695
      %v2170 = vpow.pop %v2169
      %v2171 = vmul.f32 %v2071, 1.442695
      %v2172 = vpow.pop %v2171
      %v2173 = vmul.f32 %v2072, 1.442695
      %v2174 = vpow.pop %v2173
      %v2175 = vmul.f32 %v2073, 1.442695
      %v2176 = vpow.pop %v2175
      %v2177 = vmul.f32 %v2074, 1.442695
      %v2178 = vpow.pop %v2177
      %v2179 = vmul.f32 %v2075, 1.442695
      %v2180 = vpow.pop %v2179
      %v2181 = vmul.f32 %v2076, 1.442695
      %v2182 = vpow.pop %v2181
      %v2183 = vmul.f32 %v2077, 1.442695
      %v2184 = vpow.pop %v2183
      %v2185 = vmul.f32 %v2078, 1.442695
      %v2186 = vpow.pop %v2185
      %v2187 = vmul.f32 %v2079, 1.442695
      %v2188 = vpow.pop %v2187
      %v2189 = vmul.f32 %v2080, 1.442695
      %v2190 = vpow.pop %v2189
      %v2191 = vmul.f32 %v2081, 1.442695
      %v2192 = vpow.pop %v2191
      %v2193 = vmul.f32 %v2082, 1.442695
      %v2194 = vpow.pop %v2193
      %v2195 = vmul.f32 %v2083, 1.442695
      %v2196 = vpow.pop %v2195
      %v2197 = vmul.f32 %v2084, 1.442695
      %v2198 = vpow.pop %v2197
      %v2199 = vmul.f32 %v2085, 1.442695
      %v2200 = vpow.pop %v2199
      %v2201 = vmul.f32 %v2086, 1.442695
      %v2202 = vpow.pop %v2201
      %v2203 = vmul.f32 %v2087, 1.442695
      %v2204 = vpow.pop %v2203
      %v2205 = vmul.f32 %v2088, 1.442695
      %v2206 = vpow.pop %v2205
      %v2207 = vmul.f32 %v2089, 1.442695
      %v2208 = vpow.pop %v2207
      %v2209 = vmul.f32 %v2090, 1.442695
      %v2210 = vpow.pop %v2209
      %v2211 = vmul.f32 %v2091, 1.442695
      %v2212 = vpow.pop %v2211
      %v2213 = vmul.f32 %v2092, 1.442695
      %v2214 = vpow.pop %v2213
      %v2215 = vmul.f32 %v2093, 1.442695
      %v2216 = vpow.pop %v2215
      %v2217 = vmul.f32 %v2094, 1.442695
      %v2218 = vpow.pop %v2217
      %v2219 = vmul.f32 %v2095, 1.442695
      %v2220 = vpow.pop %v2219
      %v2221 = vmul.f32 %v2096, 1.442695
      %v2222 = vpow.pop %v2221
      %v2223 = vmul.f32 %v2097, 1.442695
      %v2224 = vpow.pop %v2223
      %v2225 = vmul.f32 %v2098, 1.442695
      %v2226 = vpow.pop %v2225
      %2227 = vadd.xlane.f32.xlu0 %v2100
      %v2228 = vpop.xlane.xlu0 %2227
      %2229 = vadd.xlane.f32.xlu0 %v2102
      %v2230 = vpop.xlane.xlu0 %2229
      %2231 = vadd.xlane.f32.xlu0 %v2104
      %v2232 = vpop.xlane.xlu0 %2231
      %2233 = vadd.xlane.f32.xlu0 %v2106
      %v2234 = vpop.xlane.xlu0 %2233
      %2235 = vadd.xlane.f32.xlu0 %v2108
      %v2236 = vpop.xlane.xlu0 %2235
      %2237 = vadd.xlane.f32.xlu0 %v2110
      %v2238 = vpop.xlane.xlu0 %2237
      %2239 = vadd.xlane.f32.xlu0 %v2112
      %v2240 = vpop.xlane.xlu0 %2239
      %2241 = vadd.xlane.f32.xlu0 %v2114
      %v2242 = vpop.xlane.xlu0 %2241
      %2243 = vadd.xlane.f32.xlu0 %v2116
      %v2244 = vpop.xlane.xlu0 %2243
      %2245 = vadd.xlane.f32.xlu0 %v2118
      %v2246 = vpop.xlane.xlu0 %2245
      %2247 = vadd.xlane.f32.xlu0 %v2120
      %v2248 = vpop.xlane.xlu0 %2247
      %2249 = vadd.xlane.f32.xlu0 %v2122
      %v2250 = vpop.xlane.xlu0 %2249
      %2251 = vadd.xlane.f32.xlu0 %v2124
      %v2252 = vpop.xlane.xlu0 %2251
      %2253 = vadd.xlane.f32.xlu0 %v2126
      %v2254 = vpop.xlane.xlu0 %2253
      %2255 = vadd.xlane.f32.xlu0 %v2128
      %v2256 = vpop.xlane.xlu0 %2255
      %2257 = vadd.xlane.f32.xlu0 %v2130
      %v2258 = vpop.xlane.xlu0 %2257
      %2259 = vadd.xlane.f32.xlu0 %v2132
      %v2260 = vpop.xlane.xlu0 %2259
      %2261 = vadd.xlane.f32.xlu0 %v2134
      %v2262 = vpop.xlane.xlu0 %2261
      %2263 = vadd.xlane.f32.xlu0 %v2136
      %v2264 = vpop.xlane.xlu0 %2263
      %2265 = vadd.xlane.f32.xlu0 %v2138
      %v2266 = vpop.xlane.xlu0 %2265
      %2267 = vadd.xlane.f32.xlu0 %v2140
      %v2268 = vpop.xlane.xlu0 %2267
      %2269 = vadd.xlane.f32.xlu0 %v2142
      %v2270 = vpop.xlane.xlu0 %2269
      %2271 = vadd.xlane.f32.xlu0 %v2144
      %v2272 = vpop.xlane.xlu0 %2271
      %2273 = vadd.xlane.f32.xlu0 %v2146
      %v2274 = vpop.xlane.xlu0 %2273
      %2275 = vadd.xlane.f32.xlu0 %v2148
      %v2276 = vpop.xlane.xlu0 %2275
      %2277 = vadd.xlane.f32.xlu0 %v2150
      %v2278 = vpop.xlane.xlu0 %2277
      %2279 = vadd.xlane.f32.xlu0 %v2152
      %v2280 = vpop.xlane.xlu0 %2279
      %2281 = vadd.xlane.f32.xlu0 %v2154
      %v2282 = vpop.xlane.xlu0 %2281
      %2283 = vadd.xlane.f32.xlu0 %v2156
      %v2284 = vpop.xlane.xlu0 %2283
      %2285 = vadd.xlane.f32.xlu0 %v2158
      %v2286 = vpop.xlane.xlu0 %2285
      %2287 = vadd.xlane.f32.xlu0 %v2160
      %v2288 = vpop.xlane.xlu0 %2287
      %2289 = vadd.xlane.f32.xlu0 %v2162
      %v2290 = vpop.xlane.xlu0 %2289
      %2291 = vadd.xlane.f32.xlu0 %v2164
      %v2292 = vpop.xlane.xlu0 %2291
      %2293 = vadd.xlane.f32.xlu0 %v2166
      %v2294 = vpop.xlane.xlu0 %2293
      %2295 = vadd.xlane.f32.xlu0 %v2168
      %v2296 = vpop.xlane.xlu0 %2295
      %2297 = vadd.xlane.f32.xlu0 %v2170
      %v2298 = vpop.xlane.xlu0 %2297
      %2299 = vadd.xlane.f32.xlu0 %v2172
      %v2300 = vpop.xlane.xlu0 %2299
      %2301 = vadd.xlane.f32.xlu0 %v2174
      %v2302 = vpop.xlane.xlu0 %2301
      %2303 = vadd.xlane.f32.xlu0 %v2176
      %v2304 = vpop.xlane.xlu0 %2303
      %2305 = vadd.xlane.f32.xlu0 %v2178
      %v2306 = vpop.xlane.xlu0 %2305
      %2307 = vadd.xlane.f32.xlu0 %v2180
      %v2308 = vpop.xlane.xlu0 %2307
      %2309 = vadd.xlane.f32.xlu0 %v2182
      %v2310 = vpop.xlane.xlu0 %2309
      %2311 = vadd.xlane.f32.xlu0 %v2184
      %v2312 = vpop.xlane.xlu0 %2311
      %2313 = vadd.xlane.f32.xlu0 %v2186
      %v2314 = vpop.xlane.xlu0 %2313
      %2315 = vadd.xlane.f32.xlu0 %v2188
      %v2316 = vpop.xlane.xlu0 %2315
      %2317 = vadd.xlane.f32.xlu0 %v2190
      %v2318 = vpop.xlane.xlu0 %2317
      %2319 = vadd.xlane.f32.xlu0 %v2192
      %v2320 = vpop.xlane.xlu0 %2319
      %2321 = vadd.xlane.f32.xlu0 %v2194
      %v2322 = vpop.xlane.xlu0 %2321
      %2323 = vadd.xlane.f32.xlu0 %v2196
      %v2324 = vpop.xlane.xlu0 %2323
      %2325 = vadd.xlane.f32.xlu0 %v2198
      %v2326 = vpop.xlane.xlu0 %2325
      %2327 = vadd.xlane.f32.xlu0 %v2200
      %v2328 = vpop.xlane.xlu0 %2327
      %2329 = vadd.xlane.f32.xlu0 %v2202
      %v2330 = vpop.xlane.xlu0 %2329
      %2331 = vadd.xlane.f32.xlu0 %v2204
      %v2332 = vpop.xlane.xlu0 %2331
      %2333 = vadd.xlane.f32.xlu0 %v2206
      %v2334 = vpop.xlane.xlu0 %2333
      %2335 = vadd.xlane.f32.xlu0 %v2208
      %v2336 = vpop.xlane.xlu0 %2335
      %2337 = vadd.xlane.f32.xlu0 %v2210
      %v2338 = vpop.xlane.xlu0 %2337
      %2339 = vadd.xlane.f32.xlu0 %v2212
      %v2340 = vpop.xlane.xlu0 %2339
      %2341 = vadd.xlane.f32.xlu0 %v2214
      %v2342 = vpop.xlane.xlu0 %2341
      %2343 = vadd.xlane.f32.xlu0 %v2216
      %v2344 = vpop.xlane.xlu0 %2343
      %2345 = vadd.xlane.f32.xlu0 %v2218
      %v2346 = vpop.xlane.xlu0 %2345
      %2347 = vadd.xlane.f32.xlu0 %v2220
      %v2348 = vpop.xlane.xlu0 %2347
      %2349 = vadd.xlane.f32.xlu0 %v2222
      %v2350 = vpop.xlane.xlu0 %2349
      %2351 = vadd.xlane.f32.xlu0 %v2224
      %v2352 = vpop.xlane.xlu0 %2351
      %2353 = vadd.xlane.f32.xlu0 %v2226
      %v2354 = vpop.xlane.xlu0 %2353
      %v2355 = vrcp.pop %v2228
      %v2356 = vrcp.pop %v2230
      %v2357 = vrcp.pop %v2232
      %v2358 = vrcp.pop %v2234
      %v2359 = vrcp.pop %v2236
      %v2360 = vrcp.pop %v2238
      %v2361 = vrcp.pop %v2240
      %v2362 = vrcp.pop %v2242
      %v2363 = vrcp.pop %v2244
      %v2364 = vrcp.pop %v2246
      %v2365 = vrcp.pop %v2248
      %v2366 = vrcp.pop %v2250
      %v2367 = vrcp.pop %v2252
      %v2368 = vrcp.pop %v2254
      %v2369 = vrcp.pop %v2256
      %v2370 = vrcp.pop %v2258
      %v2371 = vrcp.pop %v2260
      %v2372 = vrcp.pop %v2262
      %v2373 = vrcp.pop %v2264
      %v2374 = vrcp.pop %v2266
      %v2375 = vrcp.pop %v2268
      %v2376 = vrcp.pop %v2270
      %v2377 = vrcp.pop %v2272
      %v2378 = vrcp.pop %v2274
      %v2379 = vrcp.pop %v2276
      %v2380 = vrcp.pop %v2278
      %v2381 = vrcp.pop %v2280
      %v2382 = vrcp.pop %v2282
      %v2383 = vrcp.pop %v2284
      %v2384 = vrcp.pop %v2286
      %v2385 = vrcp.pop %v2288
      %v2386 = vrcp.pop %v2290
      %v2387 = vrcp.pop %v2292
      %v2388 = vrcp.pop %v2294
      %v2389 = vrcp.pop %v2296
      %v2390 = vrcp.pop %v2298
      %v2391 = vrcp.pop %v2300
      %v2392 = vrcp.pop %v2302
      %v2393 = vrcp.pop %v2304
      %v2394 = vrcp.pop %v2306
      %v2395 = vrcp.pop %v2308
      %v2396 = vrcp.pop %v2310
      %v2397 = vrcp.pop %v2312
      %v2398 = vrcp.pop %v2314
      %v2399 = vrcp.pop %v2316
      %v2400 = vrcp.pop %v2318
      %v2401 = vrcp.pop %v2320
      %v2402 = vrcp.pop %v2322
      %v2403 = vrcp.pop %v2324
      %v2404 = vrcp.pop %v2326
      %v2405 = vrcp.pop %v2328
      %v2406 = vrcp.pop %v2330
      %v2407 = vrcp.pop %v2332
      %v2408 = vrcp.pop %v2334
      %v2409 = vrcp.pop %v2336
      %v2410 = vrcp.pop %v2338
      %v2411 = vrcp.pop %v2340
      %v2412 = vrcp.pop %v2342
      %v2413 = vrcp.pop %v2344
      %v2414 = vrcp.pop %v2346
      %v2415 = vrcp.pop %v2348
      %v2416 = vrcp.pop %v2350
      %v2417 = vrcp.pop %v2352
      %v2418 = vrcp.pop %v2354
      %v2419 = vmul.f32 %v2100, %v2355
      %v2420 = vmul.f32 %v2102, %v2356
      %v2421 = vmul.f32 %v2104, %v2357
      %v2422 = vmul.f32 %v2106, %v2358
      %v2423 = vmul.f32 %v2108, %v2359
      %v2424 = vmul.f32 %v2110, %v2360
      %v2425 = vmul.f32 %v2112, %v2361
      %v2426 = vmul.f32 %v2114, %v2362
      %v2427 = vmul.f32 %v2116, %v2363
      %v2428 = vmul.f32 %v2118, %v2364
      %v2429 = vmul.f32 %v2120, %v2365
      %v2430 = vmul.f32 %v2122, %v2366
      %v2431 = vmul.f32 %v2124, %v2367
      %v2432 = vmul.f32 %v2126, %v2368
      %v2433 = vmul.f32 %v2128, %v2369
      %v2434 = vmul.f32 %v2130, %v2370
      %v2435 = vmul.f32 %v2132, %v2371
      %v2436 = vmul.f32 %v2134, %v2372
      %v2437 = vmul.f32 %v2136, %v2373
      %v2438 = vmul.f32 %v2138, %v2374
      %v2439 = vmul.f32 %v2140, %v2375
      %v2440 = vmul.f32 %v2142, %v2376
      %v2441 = vmul.f32 %v2144, %v2377
      %v2442 = vmul.f32 %v2146, %v2378
      %v2443 = vmul.f32 %v2148, %v2379
      %v2444 = vmul.f32 %v2150, %v2380
      %v2445 = vmul.f32 %v2152, %v2381
      %v2446 = vmul.f32 %v2154, %v2382
      %v2447 = vmul.f32 %v2156, %v2383
      %v2448 = vmul.f32 %v2158, %v2384
      %v2449 = vmul.f32 %v2160, %v2385
      %v2450 = vmul.f32 %v2162, %v2386
      %v2451 = vmul.f32 %v2164, %v2387
      %v2452 = vmul.f32 %v2166, %v2388
      %v2453 = vmul.f32 %v2168, %v2389
      %v2454 = vmul.f32 %v2170, %v2390
      %v2455 = vmul.f32 %v2172, %v2391
      %v2456 = vmul.f32 %v2174, %v2392
      %v2457 = vmul.f32 %v2176, %v2393
      %v2458 = vmul.f32 %v2178, %v2394
      %v2459 = vmul.f32 %v2180, %v2395
      %v2460 = vmul.f32 %v2182, %v2396
      %v2461 = vmul.f32 %v2184, %v2397
      %v2462 = vmul.f32 %v2186, %v2398
      %v2463 = vmul.f32 %v2188, %v2399
      %v2464 = vmul.f32 %v2190, %v2400
      %v2465 = vmul.f32 %v2192, %v2401
      %v2466 = vmul.f32 %v2194, %v2402
      %v2467 = vmul.f32 %v2196, %v2403
      %v2468 = vmul.f32 %v2198, %v2404
      %v2469 = vmul.f32 %v2200, %v2405
      %v2470 = vmul.f32 %v2202, %v2406
      %v2471 = vmul.f32 %v2204, %v2407
      %v2472 = vmul.f32 %v2206, %v2408
      %v2473 = vmul.f32 %v2208, %v2409
      %v2474 = vmul.f32 %v2210, %v2410
      %v2475 = vmul.f32 %v2212, %v2411
      %v2476 = vmul.f32 %v2214, %v2412
      %v2477 = vmul.f32 %v2216, %v2413
      %v2478 = vmul.f32 %v2218, %v2414
      %v2479 = vmul.f32 %v2220, %v2415
      %v2480 = vmul.f32 %v2222, %v2416
      %v2481 = vmul.f32 %v2224, %v2417
      %v2482 = vmul.f32 %v2226, %v2418
      %2483 = vst [vmem:[%s280] sm:$0xff] %v2419
      %2484 = vst [vmem:[%s280 + $0x8] sm:$0xff] %v2420
      %2485 = vst [vmem:[%s280 + $0x10] sm:$0xff] %v2421
      %2486 = vst [vmem:[%s280 + $0x18] sm:$0xff] %v2422
      %2487 = vst [vmem:[%s280 + $0x20] sm:$0xff] %v2423
      %2488 = vst [vmem:[%s280 + $0x28] sm:$0xff] %v2424
      %2489 = vst [vmem:[%s280 + $0x30] sm:$0xff] %v2425
      %2490 = vst [vmem:[%s280 + $0x38] sm:$0xff] %v2426
      %2491 = vst [vmem:[%s280 + $0x40] sm:$0xff] %v2427
      %2492 = vst [vmem:[%s280 + $0x48] sm:$0xff] %v2428
      %2493 = vst [vmem:[%s280 + $0x50] sm:$0xff] %v2429
      %2494 = vst [vmem:[%s280 + $0x58] sm:$0xff] %v2430
      %2495 = vst [vmem:[%s280 + $0x60] sm:$0xff] %v2431
      %2496 = vst [vmem:[%s280 + $0x68] sm:$0xff] %v2432
      %2497 = vst [vmem:[%s280 + $0x70] sm:$0xff] %v2433
      %2498 = vst [vmem:[%s280 + $0x78] sm:$0xff] %v2434
      %2499 = vst [vmem:[%s280 + $0x80] sm:$0xff] %v2435
      %2500 = vst [vmem:[%s280 + $0x88] sm:$0xff] %v2436
      %2501 = vst [vmem:[%s280 + $0x90] sm:$0xff] %v2437
      %2502 = vst [vmem:[%s280 + $0x98] sm:$0xff] %v2438
      %2503 = vst [vmem:[%s280 + $0xa0] sm:$0xff] %v2439
      %2504 = vst [vmem:[%s280 + $0xa8] sm:$0xff] %v2440
      %2505 = vst [vmem:[%s280 + $0xb0] sm:$0xff] %v2441
      %2506 = vst [vmem:[%s280 + $0xb8] sm:$0xff] %v2442
      %2507 = vst [vmem:[%s280 + $0xc0] sm:$0xff] %v2443
      %2508 = vst [vmem:[%s280 + $0xc8] sm:$0xff] %v2444
      %2509 = vst [vmem:[%s280 + $0xd0] sm:$0xff] %v2445
      %2510 = vst [vmem:[%s280 + $0xd8] sm:$0xff] %v2446
      %2511 = vst [vmem:[%s280 + $0xe0] sm:$0xff] %v2447
      %2512 = vst [vmem:[%s280 + $0xe8] sm:$0xff] %v2448
      %2513 = vst [vmem:[%s280 + $0xf0] sm:$0xff] %v2449
      %2514 = vst [vmem:[%s280 + $0xf8] sm:$0xff] %v2450
      %2515 = vst [vmem:[%s280 + $0x100] sm:$0xff] %v2451
      %2516 = vst [vmem:[%s280 + $0x108] sm:$0xff] %v2452
      %2517 = vst [vmem:[%s280 + $0x110] sm:$0xff] %v2453
      %2518 = vst [vmem:[%s280 + $0x118] sm:$0xff] %v2454
      %2519 = vst [vmem:[%s280 + $0x120] sm:$0xff] %v2455
      %2520 = vst [vmem:[%s280 + $0x128] sm:$0xff] %v2456
      %2521 = vst [vmem:[%s280 + $0x130] sm:$0xff] %v2457
      %2522 = vst [vmem:[%s280 + $0x138] sm:$0xff] %v2458
      %2523 = vst [vmem:[%s280 + $0x140] sm:$0xff] %v2459
      %2524 = vst [vmem:[%s280 + $0x148] sm:$0xff] %v2460
      %2525 = vst [vmem:[%s280 + $0x150] sm:$0xff] %v2461
      %2526 = vst [vmem:[%s280 + $0x158] sm:$0xff] %v2462
      %2527 = vst [vmem:[%s280 + $0x160] sm:$0xff] %v2463
      %2528 = vst [vmem:[%s280 + $0x168] sm:$0xff] %v2464
      %2529 = vst [vmem:[%s280 + $0x170] sm:$0xff] %v2465
      %2530 = vst [vmem:[%s280 + $0x178] sm:$0xff] %v2466
      %2531 = vst [vmem:[%s280 + $0x180] sm:$0xff] %v2467
      %2532 = vst [vmem:[%s280 + $0x188] sm:$0xff] %v2468
      %2533 = vst [vmem:[%s280 + $0x190] sm:$0xff] %v2469
      %2534 = vst [vmem:[%s280 + $0x198] sm:$0xff] %v2470
      %2535 = vst [vmem:[%s280 + $0x1a0] sm:$0xff] %v2471
      %2536 = vst [vmem:[%s280 + $0x1a8] sm:$0xff] %v2472
      %2537 = vst [vmem:[%s280 + $0x1b0] sm:$0xff] %v2473
      %2538 = vst [vmem:[%s280 + $0x1b8] sm:$0xff] %v2474
      %2539 = vst [vmem:[%s280 + $0x1c0] sm:$0xff] %v2475
      %2540 = vst [vmem:[%s280 + $0x1c8] sm:$0xff] %v2476
      %2541 = vst [vmem:[%s280 + $0x1d0] sm:$0xff] %v2477
      %2542 = vst [vmem:[%s280 + $0x1d8] sm:$0xff] %v2478
      %2543 = vst [vmem:[%s280 + $0x1e0] sm:$0xff] %v2479
      %2544 = vst [vmem:[%s280 + $0x1e8] sm:$0xff] %v2480
      %2545 = vst [vmem:[%s280 + $0x1f0] sm:$0xff] %v2481
      %2546 = vst [vmem:[%s280 + $0x1f8] sm:$0xff] %v2482
      %s2547 = smul.u32 64, %s18
      %p2548 = scmp.lt.s32.totalorder %s2547, 127
      %s2549 = scalar_select %p2548, %s2547, 127
      %s2550 = smul.addr %s2549, 8
      %s2551 = scalar_lea.vmem %s7, %s2550
      // Predicated region
      $region49: #{classifier_forward.1} parent=47 // pred_check
        %p2552 = pneg %p188
      $region50: #{classifier_forward.1} parent=47 // pred_check_branch
        %2554 = sbr.rel (%p2552) target = $region52
      $region51: #{classifier_forward.1} parent=47 // pred_region
        %s2555 = smul.u32 64, %s18
      $region52: #{classifier_forward.1} parent=47 // pred_fallthru
        _
    $region48: #{classifier_forward.1} parent=5 // pred_fallthru
      _
    %p2556 = scmp.le.s32.totalorder 2, %s13
    // Predicated region
    $region53: #{classifier_forward.1} parent=5 // pred_check
      %p2557 = pneg %p2556
    $region54: #{classifier_forward.1} parent=5 // pred_check_branch
      %2559 = sbr.rel (%p2557) target = $region56
    $region55: #{classifier_forward.1} parent=5 // pred_region
      %s2560 = ssub.s32 %s13, 2
      // Predicated region
      $region57: #{classifier_forward.1} parent=55 // pred_check
        %p2561 = pneg %p194
      $region58: #{classifier_forward.1} parent=55 // pred_check_branch
        %2563 = sbr.rel (%p2561) target = $region60
      $region59: #{classifier_forward.1} parent=55 // pred_region
        %s2564 = smul.u32 64, %s19
        %p2565 = scmp.lt.s32.totalorder %s2564, 127
        %s2566 = scalar_select %p2565, %s2564, 127
        %s2567 = smul.addr %s2566, 8
        %s2568 = scalar_lea.vmem %s7, %s2567
      $region60: #{classifier_forward.1} parent=55 // pred_fallthru
        _
    $region56: #{classifier_forward.1} parent=5 // pred_fallthru
      _
  $region6: #{classifier_forward.1} parent=0 // loop_footer
    %s17 = sadd.s32 1, %s13
  $region7: #{classifier_forward.1} parent=0 // loop_footer_branch
    %12 = sbr.rel target = $region3
  $region8: #{classifier_forward.1} parent=0 // loop_exit
    _

</llo_original>
